<compile_context>
chip_gen: v6e
topology: v6e:2x2x1
jax: 0.10.0
libtpu: 0.0.40
codegen_flags: <defaults>
</compile_context>

<pallas_src>
import math
import functools

import jax
import jax.numpy as jnp
from jax.experimental import pallas as pl
from jax.experimental.pallas import tpu as pltpu


# ----------------------------- kernel helpers --------------------------------

def _layer_norm(x, w, b, eps=1e-5):
    """LayerNorm over last dim (f32); w, b have shape (1, D)."""
    mu = jnp.mean(x, axis=-1, keepdims=True)
    var = jnp.mean(jnp.square(x - mu), axis=-1, keepdims=True)
    return (x - mu) * jax.lax.rsqrt(var + eps) * w + b


def _gelu_erf(x):
    """Exact (erf) GELU in f32, matching PyTorch activation='gelu'."""
    return 0.5 * x * (1.0 + jax.lax.erf(x * (1.0 / math.sqrt(2.0))))


# ------------------------------ fused kernel ---------------------------------

def fused_encoder_kernel(x_ref, in_w_ref, pe_ref,
                         wqkv_ref, bqkv_ref, wo_ref, bo_ref,
                         ln1w_ref, ln1b_ref,
                         w1_ref, b1_ref, w2_ref, b2_ref,
                         ln2w_ref, ln2b_ref,
                         out_ref, h_ref,
                         *, nhead, batch_tile, seq_len):
    """Grid = (batch_tile_idx, layer_idx); layer axis innermost ("arbitrary").

    h_ref: VMEM-resident activation (batch_tile*seq_len, D) f32, carried across
    the layer axis.  Layer 0 additionally performs input projection + PE."""
    layer = pl.program_id(1)
    n_rows, d_model = h_ref.shape
    dh = d_model // nhead
    scale = 1.0 / math.sqrt(dh)
    bf16 = jnp.bfloat16
    f32 = jnp.float32

    # ---- layer 0: input projection + (PE + input bias), into resident scratch
    @pl.when(layer == 0)
    def _():
        xb = x_ref[...].astype(bf16)
        h0 = jnp.dot(xb, in_w_ref[...], preferred_element_type=f32) + pe_ref[...]
        h_ref[...] = h0

    h = h_ref[...]                                  # (rows, D) f32
    hb = h.astype(bf16)

    # ---- fused QKV projection: one MXU pass with N = 3D
    qkv = jnp.dot(hb, wqkv_ref[0], preferred_element_type=f32) + bqkv_ref[0]

    q = qkv[:, :d_model].reshape(batch_tile, seq_len, d_model).astype(bf16)
    k = qkv[:, d_model:2 * d_model].reshape(batch_tile, seq_len, d_model).astype(bf16)
    v = qkv[:, 2 * d_model:].reshape(batch_tile, seq_len, d_model).astype(bf16)

    # ---- multi-head attention; output projection accumulated per head
    wo = wo_ref[0]                                  # (D, D) bf16
    attn = jnp.zeros((n_rows, d_model), f32)
    for hidx in range(nhead):
        lo, hi = hidx * dh, (hidx + 1) * dh
        s = jnp.einsum('bqd,bkd->bqk', q[:, :, lo:hi], k[:, :, lo:hi],
                       preferred_element_type=f32) * scale
        m = jnp.max(s, axis=-1, keepdims=True)
        e = jnp.exp(s - m)
        p = e * pl.reciprocal(jnp.sum(e, axis=-1, keepdims=True), approx=True)
        ctx = jnp.einsum('bqk,bkd->bqd', p.astype(bf16), v[:, :, lo:hi],
                         preferred_element_type=f32)          # (bt, S, dh) f32
        attn = attn + jnp.dot(ctx.reshape(n_rows, dh).astype(bf16),
                              wo[lo:hi, :], preferred_element_type=f32)
    attn = attn + bo_ref[0]

    # ---- residual + LayerNorm 1 (post-norm), f32
    h1 = _layer_norm(h + attn, ln1w_ref[0], ln1b_ref[0])

    # ---- feed-forward (bf16 matmuls, f32 GELU/adds)
    f = jnp.dot(h1.astype(bf16), w1_ref[0], preferred_element_type=f32) + b1_ref[0]
    f = _gelu_erf(f)
    f = jnp.dot(f.astype(bf16), w2_ref[0], preferred_element_type=f32) + b2_ref[0]

    # ---- residual + LayerNorm 2 (post-norm)
    h2 = _layer_norm(h1 + f, ln2w_ref[0], ln2b_ref[0])
    h_ref[...] = h2

    @pl.when(layer == pl.num_programs(1) - 1)
    def _():
        out_ref[...] = h2.astype(out_ref.dtype)


# --------------------------- glue / wrapper ----------------------------------

def sine_positional_encoding(seq_len, d_model):
    assert d_model % 2 == 0, "sinusoidal PE requires even d_model"
    pos = jnp.arange(seq_len, dtype=jnp.float32)[:, None]
    div = jnp.exp(jnp.arange(0, d_model, 2, dtype=jnp.float32)
                  * (-math.log(10000.0) / d_model))
    pe = jnp.zeros((seq_len, d_model), jnp.float32)
    pe = pe.at[:, 0::2].set(jnp.sin(pos * div))
    pe = pe.at[:, 1::2].set(jnp.cos(pos * div))
    return pe


def init_params(key, input_dim, d_model, nhead, num_layers, dim_feedforward):
    """Deterministic synthetic init. Weights stored bf16 (MXU), biases/LN f32.
    Per-layer weights are stacked along a leading L axis for the layer grid."""
    def dense(k, fan_in, fan_out):
        bound = 1.0 / math.sqrt(fan_in)
        kw, kb = jax.random.split(k)
        w = jax.random.uniform(kw, (fan_in, fan_out), jnp.float32, -bound, bound)
        b = jax.random.uniform(kb, (1, fan_out), jnp.float32, -bound, bound)
        return w, b

    keys = jax.random.split(key, 1 + num_layers)
    in_w, in_b = dense(keys[0], input_dim, d_model)

    wqkv, bqkv, wo, bo, w1, b1, w2, b2 = ([] for _ in range(8))
    for li in range(num_layers):
        ks = jax.random.split(keys[1 + li], 6)
        wq, bq = dense(ks[0], d_model, d_model)
        wk, bk = dense(ks[1], d_model, d_model)
        wv, bv = dense(ks[2], d_model, d_model)
        wqkv.append(jnp.concatenate([wq, wk, wv], axis=1))      # (D, 3D)
        bqkv.append(jnp.concatenate([bq, bk, bv], axis=1))      # (1, 3D)
        w, b = dense(ks[3], d_model, d_model); wo.append(w); bo.append(b)
        w, b = dense(ks[4], d_model, dim_feedforward); w1.append(w); b1.append(b)
        w, b = dense(ks[5], dim_feedforward, d_model); w2.append(w); b2.append(b)

    ones = jnp.ones((num_layers, 1, d_model), jnp.float32)
    zeros = jnp.zeros((num_layers, 1, d_model), jnp.float32)
    return dict(
        in_w=in_w.astype(jnp.bfloat16), in_b=in_b,
        wqkv=jnp.stack(wqkv).astype(jnp.bfloat16), bqkv=jnp.stack(bqkv),
        wo=jnp.stack(wo).astype(jnp.bfloat16), bo=jnp.stack(bo),
        ln1_w=ones, ln1_b=zeros,
        w1=jnp.stack(w1).astype(jnp.bfloat16), b1=jnp.stack(b1),
        w2=jnp.stack(w2).astype(jnp.bfloat16), b2=jnp.stack(b2),
        ln2_w=ones, ln2_b=zeros,
    )


def sequence_encoder_forward(x, params, nhead, *, batch_tile=1):
    """x: (B, S, input_dim) f32 -> (B, S, d_model) f32. Single fused pallas_call."""
    B, S, input_dim = x.shape
    D = params['in_w'].shape[1]
    L = params['wqkv'].shape[0]
    F = params['w1'].shape[2]
    assert D % nhead == 0
    assert B % batch_tile == 0
    n_tile_rows = batch_tile * S
    N = B * S

    # Fold input-projection bias into the PE table; tile over batch for the
    # flattened (B*S, D) layout.
    pe_bias = jnp.tile(sine_positional_encoding(S, D) + params['in_b'], (B, 1))

    x2 = x.reshape(N, input_dim)                    # flatten in the wrapper

    def rows(shape):       # batch-tile-indexed block (constant across layers)
        return pl.BlockSpec(shape, lambda b, l: (b, 0))

    def const2(shape):     # shared across the whole grid
        return pl.BlockSpec(shape, lambda b, l: (0, 0))

    def per_layer(shape):  # stacked (L, ...) weight, indexed by the layer axis
        return pl.BlockSpec((1,) + shape, lambda b, l: (l,) + (0,) * len(shape))

    kernel = functools.partial(fused_encoder_kernel, nhead=nhead,
                               batch_tile=batch_tile, seq_len=S)

    out = pl.pallas_call(
        kernel,
        out_shape=jax.ShapeDtypeStruct((N, D), jnp.float32),
        grid_spec=pltpu.PrefetchScalarGridSpec(
            num_scalar_prefetch=0,
            grid=(B // batch_tile, L),
            in_specs=[
                rows((n_tile_rows, input_dim)),     # x (flattened)
                const2((input_dim, D)),             # in_w
                rows((n_tile_rows, D)),             # pe + in_b
                per_layer((D, 3 * D)),              # wqkv
                per_layer((1, 3 * D)),              # bqkv
                per_layer((D, D)),                  # wo
                per_layer((1, D)),                  # bo
                per_layer((1, D)),                  # ln1_w
                per_layer((1, D)),                  # ln1_b
                per_layer((D, F)),                  # w1
                per_layer((1, F)),                  # b1
                per_layer((F, D)),                  # w2
                per_layer((1, D)),                  # b2
                per_layer((1, D)),                  # ln2_w
                per_layer((1, D)),                  # ln2_b
            ],
            out_specs=pl.BlockSpec((n_tile_rows, D), lambda b, l: (b, 0)),
            scratch_shapes=[pltpu.VMEM((n_tile_rows, D), jnp.float32)],
        ),
        compiler_params=pltpu.CompilerParams(
            dimension_semantics=("parallel", "arbitrary")),
    )(x2, params['in_w'], pe_bias,
      params['wqkv'], params['bqkv'], params['wo'], params['bo'],
      params['ln1_w'], params['ln1_b'],
      params['w1'], params['b1'], params['w2'], params['b2'],
      params['ln2_w'], params['ln2_b'])

    return out.reshape(B, S, D)


if __name__ == "__main__":
    # small shapes consistent with the module's forward
    batch, seq_len, input_dim = 2, 8, 8
    d_model, nhead, num_layers, dim_feedforward = 32, 4, 2, 64

    key = jax.random.PRNGKey(0)
    kx, kp = jax.random.split(key)
    x = jax.random.normal(kx, (batch, seq_len, input_dim), jnp.float32)
    params = init_params(kp, input_dim, d_model, nhead, num_layers,
                         dim_feedforward)

    out = sequence_encoder_forward(x, params, nhead)
    out = jax.block_until_ready(out)
    assert out.shape == (batch, seq_len, d_model)
    assert bool(jnp.all(jnp.isfinite(out)))
    print("KERNEL_OK")
</pallas_src>

<mosaic_0001>
module attributes {stable_mosaic.version = 11 : i64} {
  func.func @fused_encoder_kernel(%arg0: i32, %arg1: i32, %arg2: memref<8x8xf32, #tpu.memory_space<vmem>>, %arg3: memref<8x32xbf16, #tpu.memory_space<vmem>>, %arg4: memref<8x32xf32, #tpu.memory_space<vmem>>, %arg5: memref<1x32x96xbf16, #tpu.memory_space<vmem>>, %arg6: memref<1x1x96xf32, #tpu.memory_space<vmem>>, %arg7: memref<1x32x32xbf16, #tpu.memory_space<vmem>>, %arg8: memref<1x1x32xf32, #tpu.memory_space<vmem>>, %arg9: memref<1x1x32xf32, #tpu.memory_space<vmem>>, %arg10: memref<1x1x32xf32, #tpu.memory_space<vmem>>, %arg11: memref<1x32x64xbf16, #tpu.memory_space<vmem>>, %arg12: memref<1x1x64xf32, #tpu.memory_space<vmem>>, %arg13: memref<1x64x32xbf16, #tpu.memory_space<vmem>>, %arg14: memref<1x1x32xf32, #tpu.memory_space<vmem>>, %arg15: memref<1x1x32xf32, #tpu.memory_space<vmem>>, %arg16: memref<1x1x32xf32, #tpu.memory_space<vmem>>, %arg17: memref<8x32xf32, #tpu.memory_space<vmem>>, %arg18: memref<8x32xf32, #tpu.memory_space<vmem>>) attributes {dimension_semantics = [#tpu.dimension_semantics<parallel>, #tpu.dimension_semantics<arbitrary>], iteration_bounds = array<i64: 2, 2>, scalar_prefetch = 0 : i64, scratch_operands = 1 : i64, tpu.core_type = #tpu.core_type<tc>, window_params = [{transform_indices = @transform_0, window_bounds = array<i64: 8, 8>}, {pipeline_mode = #tpu.pipeline_mode<synchronous>, transform_indices = @transform_1, window_bounds = array<i64: 8, 32>}, {transform_indices = @transform_2, window_bounds = array<i64: 8, 32>}, {transform_indices = @transform_3, window_bounds = array<i64: 1, 32, 96>}, {transform_indices = @transform_4, window_bounds = array<i64: 1, 1, 96>}, {transform_indices = @transform_5, window_bounds = array<i64: 1, 32, 32>}, {transform_indices = @transform_6, window_bounds = array<i64: 1, 1, 32>}, {transform_indices = @transform_7, window_bounds = array<i64: 1, 1, 32>}, {transform_indices = @transform_8, window_bounds = array<i64: 1, 1, 32>}, {transform_indices = @transform_9, window_bounds = array<i64: 1, 32, 64>}, {transform_indices = @transform_10, window_bounds = array<i64: 1, 1, 64>}, {transform_indices = @transform_11, window_bounds = array<i64: 1, 64, 32>}, {transform_indices = @transform_12, window_bounds = array<i64: 1, 1, 32>}, {transform_indices = @transform_13, window_bounds = array<i64: 1, 1, 32>}, {transform_indices = @transform_14, window_bounds = array<i64: 1, 1, 32>}, {transform_indices = @transform_15, window_bounds = array<i64: 8, 32>}]} {
    %c0_i32 = arith.constant 0 : i32
    %0 = arith.cmpi eq, %arg1, %c0_i32 : i32
    %1 = arith.extui %0 : i1 to i32
    %c0_i32_0 = arith.constant 0 : i32
    %2 = arith.cmpi ne, %1, %c0_i32_0 : i32
    scf.if %2 {
      %c0_81 = arith.constant 0 : index
      %c0_82 = arith.constant 0 : index
      %202 = vector.load %arg2[%c0_81, %c0_82] : memref<8x8xf32, #tpu.memory_space<vmem>>, vector<8x8xf32>
      %203 = arith.truncf %202 : vector<8x8xf32> to vector<8x8xbf16>
      %c0_83 = arith.constant 0 : index
      %c0_84 = arith.constant 0 : index
      %204 = vector.load %arg3[%c0_83, %c0_84] : memref<8x32xbf16, #tpu.memory_space<vmem>>, vector<8x32xbf16>
      %cst_85 = arith.constant dense<0.000000e+00> : vector<8x32xf32>
      %205 = tpu.matmul %203, %204, %cst_85 {dimension_numbers = #tpu.dot_dimension_numbers<[1], [0], [0], [1], [0, 0, 1, 1], [], []>} : vector<8x8xbf16>, vector<8x32xbf16>, vector<8x32xf32> -> vector<8x32xf32>
      %c0_86 = arith.constant 0 : index
      %c0_87 = arith.constant 0 : index
      %206 = vector.load %arg4[%c0_86, %c0_87] : memref<8x32xf32, #tpu.memory_space<vmem>>, vector<8x32xf32>
      %207 = arith.addf %205, %206 : vector<8x32xf32>
      %c0_88 = arith.constant 0 : index
      %c0_89 = arith.constant 0 : index
      %208 = vector.load %arg18[%c0_88, %c0_89] : memref<8x32xf32, #tpu.memory_space<vmem>>, vector<8x32xf32>
      tpu.vector_store %arg18[%c0_88, %c0_89], %207 {strides = array<i32>} : memref<8x32xf32, #tpu.memory_space<vmem>>, vector<8x32xf32>,
    } else {
    }
    %c0 = arith.constant 0 : index
    %c0_1 = arith.constant 0 : index
    %3 = vector.load %arg18[%c0, %c0_1] : memref<8x32xf32, #tpu.memory_space<vmem>>, vector<8x32xf32>
    %4 = arith.truncf %3 : vector<8x32xf32> to vector<8x32xbf16>
    %c0_2 = arith.constant 0 : index
    %c0_3 = arith.constant 0 : index
    %c0_4 = arith.constant 0 : index
    %5 = vector.load %arg5[%c0_2, %c0_3, %c0_4] : memref<1x32x96xbf16, #tpu.memory_space<vmem>>, vector<1x32x96xbf16>
    %6 = vector.shape_cast %5 : vector<1x32x96xbf16> to vector<32x96xbf16>
    %cst = arith.constant dense<0.000000e+00> : vector<8x96xf32>
    %7 = tpu.matmul %4, %6, %cst {dimension_numbers = #tpu.dot_dimension_numbers<[1], [0], [0], [1], [0, 0, 1, 1], [], []>} : vector<8x32xbf16>, vector<32x96xbf16>, vector<8x96xf32> -> vector<8x96xf32>
    %c0_5 = arith.constant 0 : index
    %c0_6 = arith.constant 0 : index
    %c0_7 = arith.constant 0 : index
    %8 = vector.load %arg6[%c0_5, %c0_6, %c0_7] : memref<1x1x96xf32, #tpu.memory_space<vmem>>, vector<1x1x96xf32>
    %9 = vector.shape_cast %8 : vector<1x1x96xf32> to vector<1x96xf32>
    %10 = vector.broadcast %9 : vector<1x96xf32> to vector<8x96xf32>
    %11 = arith.addf %7, %10 : vector<8x96xf32>
    %12 = vector.extract_strided_slice %11 {offsets = [0, 0], sizes = [8, 32], strides = [1, 1]} : vector<8x96xf32> to vector<8x32xf32>
    %13 = vector.shape_cast %12 : vector<8x32xf32> to vector<1x8x32xf32>
    %14 = arith.truncf %13 : vector<1x8x32xf32> to vector<1x8x32xbf16>
    %15 = vector.extract_strided_slice %11 {offsets = [0, 32], sizes = [8, 32], strides = [1, 1]} : vector<8x96xf32> to vector<8x32xf32>
    %16 = vector.shape_cast %15 : vector<8x32xf32> to vector<1x8x32xf32>
    %17 = arith.truncf %16 : vector<1x8x32xf32> to vector<1x8x32xbf16>
    %18 = vector.extract_strided_slice %11 {offsets = [0, 64], sizes = [8, 32], strides = [1, 1]} : vector<8x96xf32> to vector<8x32xf32>
    %19 = vector.shape_cast %18 : vector<8x32xf32> to vector<1x8x32xf32>
    %20 = arith.truncf %19 : vector<1x8x32xf32> to vector<1x8x32xbf16>
    %c0_8 = arith.constant 0 : index
    %c0_9 = arith.constant 0 : index
    %c0_10 = arith.constant 0 : index
    %21 = vector.load %arg7[%c0_8, %c0_9, %c0_10] : memref<1x32x32xbf16, #tpu.memory_space<vmem>>, vector<1x32x32xbf16>
    %22 = vector.shape_cast %21 : vector<1x32x32xbf16> to vector<32x32xbf16>
    %cst_11 = arith.constant 0.000000e+00 : f32
    %23 = vector.broadcast %cst_11 : f32 to vector<8x32xf32>
    %24 = vector.extract_strided_slice %14 {offsets = [0, 0, 0], sizes = [1, 8, 8], strides = [1, 1, 1]} : vector<1x8x32xbf16> to vector<1x8x8xbf16>
    %25 = vector.extract_strided_slice %17 {offsets = [0, 0, 0], sizes = [1, 8, 8], strides = [1, 1, 1]} : vector<1x8x32xbf16> to vector<1x8x8xbf16>
    "tpu.trace_start"() <{level = 10 : i32, message = "bqd,bkd->bqk"}> : () -> ()
    %cst_12 = arith.constant dense<0.000000e+00> : vector<1x8x8xf32>
    %26 = tpu.matmul %24, %25, %cst_12 {dimension_numbers = #tpu.dot_dimension_numbers<[2], [2], [1], [1], [0, 0, 0, 1, 1, 1], [0], [0]>} : vector<1x8x8xbf16>, vector<1x8x8xbf16>, vector<1x8x8xf32> -> vector<1x8x8xf32>
    "tpu.trace_stop"() : () -> ()
    %cst_13 = arith.constant 0.353553385 : f32
    %27 = vector.broadcast %cst_13 : f32 to vector<1x8x8xf32>
    %28 = arith.mulf %26, %27 : vector<1x8x8xf32>
    %cst_14 = arith.constant dense<0xFF800000> : vector<1x8xf32>
    %29 = vector.multi_reduction <maximumf>, %28, %cst_14 [2] : vector<1x8x8xf32> to vector<1x8xf32>
    %30 = vector.shape_cast %29 : vector<1x8xf32> to vector<1x8x1xf32>
    %31 = vector.broadcast %30 : vector<1x8x1xf32> to vector<1x8x8xf32>
    %32 = arith.subf %28, %31 : vector<1x8x8xf32>
    %33 = math.exp %32 : vector<1x8x8xf32>
    %cst_15 = arith.constant dense<0.000000e+00> : vector<1x8xf32>
    %34 = vector.multi_reduction <add>, %33, %cst_15 [2] : vector<1x8x8xf32> to vector<1x8xf32>
    %35 = vector.shape_cast %34 : vector<1x8xf32> to vector<1x8x1xf32>
    %36 = tpu.reciprocal %35 {approx = true} : vector<1x8x1xf32> -> vector<1x8x1xf32>
    %37 = vector.broadcast %36 : vector<1x8x1xf32> to vector<1x8x8xf32>
    %38 = arith.mulf %33, %37 : vector<1x8x8xf32>
    %39 = arith.truncf %38 : vector<1x8x8xf32> to vector<1x8x8xbf16>
    %40 = vector.extract_strided_slice %20 {offsets = [0, 0, 0], sizes = [1, 8, 8], strides = [1, 1, 1]} : vector<1x8x32xbf16> to vector<1x8x8xbf16>
    "tpu.trace_start"() <{level = 10 : i32, message = "bqk,bkd->bqd"}> : () -> ()
    %cst_16 = arith.constant dense<0.000000e+00> : vector<1x8x8xf32>
    %41 = tpu.matmul %39, %40, %cst_16 {dimension_numbers = #tpu.dot_dimension_numbers<[2], [1], [1], [2], [0, 0, 0, 1, 1, 2], [0], [0]>} : vector<1x8x8xbf16>, vector<1x8x8xbf16>, vector<1x8x8xf32> -> vector<1x8x8xf32>
    "tpu.trace_stop"() : () -> ()
    %42 = vector.shape_cast %41 : vector<1x8x8xf32> to vector<8x8xf32>
    %43 = arith.truncf %42 : vector<8x8xf32> to vector<8x8xbf16>
    %44 = vector.extract_strided_slice %22 {offsets = [0, 0], sizes = [8, 32], strides = [1, 1]} : vector<32x32xbf16> to vector<8x32xbf16>
    %cst_17 = arith.constant dense<0.000000e+00> : vector<8x32xf32>
    %45 = tpu.matmul %43, %44, %cst_17 {dimension_numbers = #tpu.dot_dimension_numbers<[1], [0], [0], [1], [0, 0, 1, 1], [], []>} : vector<8x8xbf16>, vector<8x32xbf16>, vector<8x32xf32> -> vector<8x32xf32>
    %46 = arith.addf %23, %45 : vector<8x32xf32>
    %47 = vector.extract_strided_slice %14 {offsets = [0, 0, 8], sizes = [1, 8, 8], strides = [1, 1, 1]} : vector<1x8x32xbf16> to vector<1x8x8xbf16>
    %48 = vector.extract_strided_slice %17 {offsets = [0, 0, 8], sizes = [1, 8, 8], strides = [1, 1, 1]} : vector<1x8x32xbf16> to vector<1x8x8xbf16>
    "tpu.trace_start"() <{level = 10 : i32, message = "bqd,bkd->bqk"}> : () -> ()
    %cst_18 = arith.constant dense<0.000000e+00> : vector<1x8x8xf32>
    %49 = tpu.matmul %47, %48, %cst_18 {dimension_numbers = #tpu.dot_dimension_numbers<[2], [2], [1], [1], [0, 0, 0, 1, 1, 1], [0], [0]>} : vector<1x8x8xbf16>, vector<1x8x8xbf16>, vector<1x8x8xf32> -> vector<1x8x8xf32>
    "tpu.trace_stop"() : () -> ()
    %cst_19 = arith.constant 0.353553385 : f32
    %50 = vector.broadcast %cst_19 : f32 to vector<1x8x8xf32>
    %51 = arith.mulf %49, %50 : vector<1x8x8xf32>
    %cst_20 = arith.constant dense<0xFF800000> : vector<1x8xf32>
    %52 = vector.multi_reduction <maximumf>, %51, %cst_20 [2] : vector<1x8x8xf32> to vector<1x8xf32>
    %53 = vector.shape_cast %52 : vector<1x8xf32> to vector<1x8x1xf32>
    %54 = vector.broadcast %53 : vector<1x8x1xf32> to vector<1x8x8xf32>
    %55 = arith.subf %51, %54 : vector<1x8x8xf32>
    %56 = math.exp %55 : vector<1x8x8xf32>
    %cst_21 = arith.constant dense<0.000000e+00> : vector<1x8xf32>
    %57 = vector.multi_reduction <add>, %56, %cst_21 [2] : vector<1x8x8xf32> to vector<1x8xf32>
    %58 = vector.shape_cast %57 : vector<1x8xf32> to vector<1x8x1xf32>
    %59 = tpu.reciprocal %58 {approx = true} : vector<1x8x1xf32> -> vector<1x8x1xf32>
    %60 = vector.broadcast %59 : vector<1x8x1xf32> to vector<1x8x8xf32>
    %61 = arith.mulf %56, %60 : vector<1x8x8xf32>
    %62 = arith.truncf %61 : vector<1x8x8xf32> to vector<1x8x8xbf16>
    %63 = vector.extract_strided_slice %20 {offsets = [0, 0, 8], sizes = [1, 8, 8], strides = [1, 1, 1]} : vector<1x8x32xbf16> to vector<1x8x8xbf16>
    "tpu.trace_start"() <{level = 10 : i32, message = "bqk,bkd->bqd"}> : () -> ()
    %cst_22 = arith.constant dense<0.000000e+00> : vector<1x8x8xf32>
    %64 = tpu.matmul %62, %63, %cst_22 {dimension_numbers = #tpu.dot_dimension_numbers<[2], [1], [1], [2], [0, 0, 0, 1, 1, 2], [0], [0]>} : vector<1x8x8xbf16>, vector<1x8x8xbf16>, vector<1x8x8xf32> -> vector<1x8x8xf32>
    "tpu.trace_stop"() : () -> ()
    %65 = vector.shape_cast %64 : vector<1x8x8xf32> to vector<8x8xf32>
    %66 = arith.truncf %65 : vector<8x8xf32> to vector<8x8xbf16>
    %67 = vector.extract_strided_slice %22 {offsets = [8, 0], sizes = [8, 32], strides = [1, 1]} : vector<32x32xbf16> to vector<8x32xbf16>
    %cst_23 = arith.constant dense<0.000000e+00> : vector<8x32xf32>
    %68 = tpu.matmul %66, %67, %cst_23 {dimension_numbers = #tpu.dot_dimension_numbers<[1], [0], [0], [1], [0, 0, 1, 1], [], []>} : vector<8x8xbf16>, vector<8x32xbf16>, vector<8x32xf32> -> vector<8x32xf32>
    %69 = arith.addf %46, %68 : vector<8x32xf32>
    %70 = vector.extract_strided_slice %14 {offsets = [0, 0, 16], sizes = [1, 8, 8], strides = [1, 1, 1]} : vector<1x8x32xbf16> to vector<1x8x8xbf16>
    %71 = vector.extract_strided_slice %17 {offsets = [0, 0, 16], sizes = [1, 8, 8], strides = [1, 1, 1]} : vector<1x8x32xbf16> to vector<1x8x8xbf16>
    "tpu.trace_start"() <{level = 10 : i32, message = "bqd,bkd->bqk"}> : () -> ()
    %cst_24 = arith.constant dense<0.000000e+00> : vector<1x8x8xf32>
    %72 = tpu.matmul %70, %71, %cst_24 {dimension_numbers = #tpu.dot_dimension_numbers<[2], [2], [1], [1], [0, 0, 0, 1, 1, 1], [0], [0]>} : vector<1x8x8xbf16>, vector<1x8x8xbf16>, vector<1x8x8xf32> -> vector<1x8x8xf32>
    "tpu.trace_stop"() : () -> ()
    %cst_25 = arith.constant 0.353553385 : f32
    %73 = vector.broadcast %cst_25 : f32 to vector<1x8x8xf32>
    %74 = arith.mulf %72, %73 : vector<1x8x8xf32>
    %cst_26 = arith.constant dense<0xFF800000> : vector<1x8xf32>
    %75 = vector.multi_reduction <maximumf>, %74, %cst_26 [2] : vector<1x8x8xf32> to vector<1x8xf32>
    %76 = vector.shape_cast %75 : vector<1x8xf32> to vector<1x8x1xf32>
    %77 = vector.broadcast %76 : vector<1x8x1xf32> to vector<1x8x8xf32>
    %78 = arith.subf %74, %77 : vector<1x8x8xf32>
    %79 = math.exp %78 : vector<1x8x8xf32>
    %cst_27 = arith.constant dense<0.000000e+00> : vector<1x8xf32>
    %80 = vector.multi_reduction <add>, %79, %cst_27 [2] : vector<1x8x8xf32> to vector<1x8xf32>
    %81 = vector.shape_cast %80 : vector<1x8xf32> to vector<1x8x1xf32>
    %82 = tpu.reciprocal %81 {approx = true} : vector<1x8x1xf32> -> vector<1x8x1xf32>
    %83 = vector.broadcast %82 : vector<1x8x1xf32> to vector<1x8x8xf32>
    %84 = arith.mulf %79, %83 : vector<1x8x8xf32>
    %85 = arith.truncf %84 : vector<1x8x8xf32> to vector<1x8x8xbf16>
    %86 = vector.extract_strided_slice %20 {offsets = [0, 0, 16], sizes = [1, 8, 8], strides = [1, 1, 1]} : vector<1x8x32xbf16> to vector<1x8x8xbf16>
    "tpu.trace_start"() <{level = 10 : i32, message = "bqk,bkd->bqd"}> : () -> ()
    %cst_28 = arith.constant dense<0.000000e+00> : vector<1x8x8xf32>
    %87 = tpu.matmul %85, %86, %cst_28 {dimension_numbers = #tpu.dot_dimension_numbers<[2], [1], [1], [2], [0, 0, 0, 1, 1, 2], [0], [0]>} : vector<1x8x8xbf16>, vector<1x8x8xbf16>, vector<1x8x8xf32> -> vector<1x8x8xf32>
    "tpu.trace_stop"() : () -> ()
    %88 = vector.shape_cast %87 : vector<1x8x8xf32> to vector<8x8xf32>
    %89 = arith.truncf %88 : vector<8x8xf32> to vector<8x8xbf16>
    %90 = vector.extract_strided_slice %22 {offsets = [16, 0], sizes = [8, 32], strides = [1, 1]} : vector<32x32xbf16> to vector<8x32xbf16>
    %cst_29 = arith.constant dense<0.000000e+00> : vector<8x32xf32>
    %91 = tpu.matmul %89, %90, %cst_29 {dimension_numbers = #tpu.dot_dimension_numbers<[1], [0], [0], [1], [0, 0, 1, 1], [], []>} : vector<8x8xbf16>, vector<8x32xbf16>, vector<8x32xf32> -> vector<8x32xf32>
    %92 = arith.addf %69, %91 : vector<8x32xf32>
    %93 = vector.extract_strided_slice %14 {offsets = [0, 0, 24], sizes = [1, 8, 8], strides = [1, 1, 1]} : vector<1x8x32xbf16> to vector<1x8x8xbf16>
    %94 = vector.extract_strided_slice %17 {offsets = [0, 0, 24], sizes = [1, 8, 8], strides = [1, 1, 1]} : vector<1x8x32xbf16> to vector<1x8x8xbf16>
    "tpu.trace_start"() <{level = 10 : i32, message = "bqd,bkd->bqk"}> : () -> ()
    %cst_30 = arith.constant dense<0.000000e+00> : vector<1x8x8xf32>
    %95 = tpu.matmul %93, %94, %cst_30 {dimension_numbers = #tpu.dot_dimension_numbers<[2], [2], [1], [1], [0, 0, 0, 1, 1, 1], [0], [0]>} : vector<1x8x8xbf16>, vector<1x8x8xbf16>, vector<1x8x8xf32> -> vector<1x8x8xf32>
    "tpu.trace_stop"() : () -> ()
    %cst_31 = arith.constant 0.353553385 : f32
    %96 = vector.broadcast %cst_31 : f32 to vector<1x8x8xf32>
    %97 = arith.mulf %95, %96 : vector<1x8x8xf32>
    %cst_32 = arith.constant dense<0xFF800000> : vector<1x8xf32>
    %98 = vector.multi_reduction <maximumf>, %97, %cst_32 [2] : vector<1x8x8xf32> to vector<1x8xf32>
    %99 = vector.shape_cast %98 : vector<1x8xf32> to vector<1x8x1xf32>
    %100 = vector.broadcast %99 : vector<1x8x1xf32> to vector<1x8x8xf32>
    %101 = arith.subf %97, %100 : vector<1x8x8xf32>
    %102 = math.exp %101 : vector<1x8x8xf32>
    %cst_33 = arith.constant dense<0.000000e+00> : vector<1x8xf32>
    %103 = vector.multi_reduction <add>, %102, %cst_33 [2] : vector<1x8x8xf32> to vector<1x8xf32>
    %104 = vector.shape_cast %103 : vector<1x8xf32> to vector<1x8x1xf32>
    %105 = tpu.reciprocal %104 {approx = true} : vector<1x8x1xf32> -> vector<1x8x1xf32>
    %106 = vector.broadcast %105 : vector<1x8x1xf32> to vector<1x8x8xf32>
    %107 = arith.mulf %102, %106 : vector<1x8x8xf32>
    %108 = arith.truncf %107 : vector<1x8x8xf32> to vector<1x8x8xbf16>
    %109 = vector.extract_strided_slice %20 {offsets = [0, 0, 24], sizes = [1, 8, 8], strides = [1, 1, 1]} : vector<1x8x32xbf16> to vector<1x8x8xbf16>
    "tpu.trace_start"() <{level = 10 : i32, message = "bqk,bkd->bqd"}> : () -> ()
    %cst_34 = arith.constant dense<0.000000e+00> : vector<1x8x8xf32>
    %110 = tpu.matmul %108, %109, %cst_34 {dimension_numbers = #tpu.dot_dimension_numbers<[2], [1], [1], [2], [0, 0, 0, 1, 1, 2], [0], [0]>} : vector<1x8x8xbf16>, vector<1x8x8xbf16>, vector<1x8x8xf32> -> vector<1x8x8xf32>
    "tpu.trace_stop"() : () -> ()
    %111 = vector.shape_cast %110 : vector<1x8x8xf32> to vector<8x8xf32>
    %112 = arith.truncf %111 : vector<8x8xf32> to vector<8x8xbf16>
    %113 = vector.extract_strided_slice %22 {offsets = [24, 0], sizes = [8, 32], strides = [1, 1]} : vector<32x32xbf16> to vector<8x32xbf16>
    %cst_35 = arith.constant dense<0.000000e+00> : vector<8x32xf32>
    %114 = tpu.matmul %112, %113, %cst_35 {dimension_numbers = #tpu.dot_dimension_numbers<[1], [0], [0], [1], [0, 0, 1, 1], [], []>} : vector<8x8xbf16>, vector<8x32xbf16>, vector<8x32xf32> -> vector<8x32xf32>
    %115 = arith.addf %92, %114 : vector<8x32xf32>
    %c0_36 = arith.constant 0 : index
    %c0_37 = arith.constant 0 : index
    %c0_38 = arith.constant 0 : index
    %116 = vector.load %arg8[%c0_36, %c0_37, %c0_38] : memref<1x1x32xf32, #tpu.memory_space<vmem>>, vector<1x1x32xf32>
    %117 = vector.shape_cast %116 : vector<1x1x32xf32> to vector<1x32xf32>
    %118 = vector.broadcast %117 : vector<1x32xf32> to vector<8x32xf32>
    %119 = arith.addf %115, %118 : vector<8x32xf32>
    %120 = arith.addf %3, %119 : vector<8x32xf32>
    %c0_39 = arith.constant 0 : index
    %c0_40 = arith.constant 0 : index
    %c0_41 = arith.constant 0 : index
    %121 = vector.load %arg9[%c0_39, %c0_40, %c0_41] : memref<1x1x32xf32, #tpu.memory_space<vmem>>, vector<1x1x32xf32>
    %122 = vector.shape_cast %121 : vector<1x1x32xf32> to vector<1x32xf32>
    %c0_42 = arith.constant 0 : index
    %c0_43 = arith.constant 0 : index
    %c0_44 = arith.constant 0 : index
    %123 = vector.load %arg10[%c0_42, %c0_43, %c0_44] : memref<1x1x32xf32, #tpu.memory_space<vmem>>, vector<1x1x32xf32>
    %124 = vector.shape_cast %123 : vector<1x1x32xf32> to vector<1x32xf32>
    %cst_45 = arith.constant dense<0.000000e+00> : vector<8xf32>
    %125 = vector.multi_reduction <add>, %120, %cst_45 [1] : vector<8x32xf32> to vector<8xf32>
    %126 = vector.shape_cast %125 : vector<8xf32> to vector<8x1xf32>
    %cst_46 = arith.constant 3.200000e+01 : f32
    %127 = vector.broadcast %cst_46 : f32 to vector<8x1xf32>
    %128 = arith.divf %126, %127 : vector<8x1xf32>
    %129 = vector.broadcast %128 : vector<8x1xf32> to vector<8x32xf32>
    %130 = arith.subf %120, %129 : vector<8x32xf32>
    %131 = arith.mulf %130, %130 : vector<8x32xf32>
    %cst_47 = arith.constant dense<0.000000e+00> : vector<8xf32>
    %132 = vector.multi_reduction <add>, %131, %cst_47 [1] : vector<8x32xf32> to vector<8xf32>
    %133 = vector.shape_cast %132 : vector<8xf32> to vector<8x1xf32>
    %cst_48 = arith.constant 3.200000e+01 : f32
    %134 = vector.broadcast %cst_48 : f32 to vector<8x1xf32>
    %135 = arith.divf %133, %134 : vector<8x1xf32>
    %136 = vector.broadcast %128 : vector<8x1xf32> to vector<8x32xf32>
    %137 = arith.subf %120, %136 : vector<8x32xf32>
    %cst_49 = arith.constant 9.99999974E-6 : f32
    %138 = vector.broadcast %cst_49 : f32 to vector<8x1xf32>
    %139 = arith.addf %135, %138 : vector<8x1xf32>
    %140 = math.rsqrt %139 : vector<8x1xf32>
    %141 = vector.broadcast %140 : vector<8x1xf32> to vector<8x32xf32>
    %142 = arith.mulf %137, %141 : vector<8x32xf32>
    %143 = vector.broadcast %122 : vector<1x32xf32> to vector<8x32xf32>
    %144 = arith.mulf %142, %143 : vector<8x32xf32>
    %145 = vector.broadcast %124 : vector<1x32xf32> to vector<8x32xf32>
    %146 = arith.addf %144, %145 : vector<8x32xf32>
    %147 = arith.truncf %146 : vector<8x32xf32> to vector<8x32xbf16>
    %c0_50 = arith.constant 0 : index
    %c0_51 = arith.constant 0 : index
    %c0_52 = arith.constant 0 : index
    %148 = vector.load %arg11[%c0_50, %c0_51, %c0_52] : memref<1x32x64xbf16, #tpu.memory_space<vmem>>, vector<1x32x64xbf16>
    %149 = vector.shape_cast %148 : vector<1x32x64xbf16> to vector<32x64xbf16>
    %cst_53 = arith.constant dense<0.000000e+00> : vector<8x64xf32>
    %150 = tpu.matmul %147, %149, %cst_53 {dimension_numbers = #tpu.dot_dimension_numbers<[1], [0], [0], [1], [0, 0, 1, 1], [], []>} : vector<8x32xbf16>, vector<32x64xbf16>, vector<8x64xf32> -> vector<8x64xf32>
    %c0_54 = arith.constant 0 : index
    %c0_55 = arith.constant 0 : index
    %c0_56 = arith.constant 0 : index
    %151 = vector.load %arg12[%c0_54, %c0_55, %c0_56] : memref<1x1x64xf32, #tpu.memory_space<vmem>>, vector<1x1x64xf32>
    %152 = vector.shape_cast %151 : vector<1x1x64xf32> to vector<1x64xf32>
    %153 = vector.broadcast %152 : vector<1x64xf32> to vector<8x64xf32>
    %154 = arith.addf %150, %153 : vector<8x64xf32>
    %cst_57 = arith.constant 5.000000e-01 : f32
    %155 = vector.broadcast %cst_57 : f32 to vector<8x64xf32>
    %156 = arith.mulf %155, %154 : vector<8x64xf32>
    %cst_58 = arith.constant 0.707106769 : f32
    %157 = vector.broadcast %cst_58 : f32 to vector<8x64xf32>
    %158 = arith.mulf %154, %157 : vector<8x64xf32>
    %159 = math.erf %158 : vector<8x64xf32>
    %cst_59 = arith.constant 1.000000e+00 : f32
    %160 = vector.broadcast %cst_59 : f32 to vector<8x64xf32>
    %161 = arith.addf %160, %159 : vector<8x64xf32>
    %162 = arith.mulf %156, %161 : vector<8x64xf32>
    %163 = arith.truncf %162 : vector<8x64xf32> to vector<8x64xbf16>
    %c0_60 = arith.constant 0 : index
    %c0_61 = arith.constant 0 : index
    %c0_62 = arith.constant 0 : index
    %164 = vector.load %arg13[%c0_60, %c0_61, %c0_62] : memref<1x64x32xbf16, #tpu.memory_space<vmem>>, vector<1x64x32xbf16>
    %165 = vector.shape_cast %164 : vector<1x64x32xbf16> to vector<64x32xbf16>
    %cst_63 = arith.constant dense<0.000000e+00> : vector<8x32xf32>
    %166 = tpu.matmul %163, %165, %cst_63 {dimension_numbers = #tpu.dot_dimension_numbers<[1], [0], [0], [1], [0, 0, 1, 1], [], []>} : vector<8x64xbf16>, vector<64x32xbf16>, vector<8x32xf32> -> vector<8x32xf32>
    %c0_64 = arith.constant 0 : index
    %c0_65 = arith.constant 0 : index
    %c0_66 = arith.constant 0 : index
    %167 = vector.load %arg14[%c0_64, %c0_65, %c0_66] : memref<1x1x32xf32, #tpu.memory_space<vmem>>, vector<1x1x32xf32>
    %168 = vector.shape_cast %167 : vector<1x1x32xf32> to vector<1x32xf32>
    %169 = vector.broadcast %168 : vector<1x32xf32> to vector<8x32xf32>
    %170 = arith.addf %166, %169 : vector<8x32xf32>
    %171 = arith.addf %146, %170 : vector<8x32xf32>
    %c0_67 = arith.constant 0 : index
    %c0_68 = arith.constant 0 : index
    %c0_69 = arith.constant 0 : index
    %172 = vector.load %arg15[%c0_67, %c0_68, %c0_69] : memref<1x1x32xf32, #tpu.memory_space<vmem>>, vector<1x1x32xf32>
    %173 = vector.shape_cast %172 : vector<1x1x32xf32> to vector<1x32xf32>
    %c0_70 = arith.constant 0 : index
    %c0_71 = arith.constant 0 : index
    %c0_72 = arith.constant 0 : index
    %174 = vector.load %arg16[%c0_70, %c0_71, %c0_72] : memref<1x1x32xf32, #tpu.memory_space<vmem>>, vector<1x1x32xf32>
    %175 = vector.shape_cast %174 : vector<1x1x32xf32> to vector<1x32xf32>
    %cst_73 = arith.constant dense<0.000000e+00> : vector<8xf32>
    %176 = vector.multi_reduction <add>, %171, %cst_73 [1] : vector<8x32xf32> to vector<8xf32>
    %177 = vector.shape_cast %176 : vector<8xf32> to vector<8x1xf32>
    %cst_74 = arith.constant 3.200000e+01 : f32
    %178 = vector.broadcast %cst_74 : f32 to vector<8x1xf32>
    %179 = arith.divf %177, %178 : vector<8x1xf32>
    %180 = vector.broadcast %179 : vector<8x1xf32> to vector<8x32xf32>
    %181 = arith.subf %171, %180 : vector<8x32xf32>
    %182 = arith.mulf %181, %181 : vector<8x32xf32>
    %cst_75 = arith.constant dense<0.000000e+00> : vector<8xf32>
    %183 = vector.multi_reduction <add>, %182, %cst_75 [1] : vector<8x32xf32> to vector<8xf32>
    %184 = vector.shape_cast %183 : vector<8xf32> to vector<8x1xf32>
    %cst_76 = arith.constant 3.200000e+01 : f32
    %185 = vector.broadcast %cst_76 : f32 to vector<8x1xf32>
    %186 = arith.divf %184, %185 : vector<8x1xf32>
    %187 = vector.broadcast %179 : vector<8x1xf32> to vector<8x32xf32>
    %188 = arith.subf %171, %187 : vector<8x32xf32>
    %cst_77 = arith.constant 9.99999974E-6 : f32
    %189 = vector.broadcast %cst_77 : f32 to vector<8x1xf32>
    %190 = arith.addf %186, %189 : vector<8x1xf32>
    %191 = math.rsqrt %190 : vector<8x1xf32>
    %192 = vector.broadcast %191 : vector<8x1xf32> to vector<8x32xf32>
    %193 = arith.mulf %188, %192 : vector<8x32xf32>
    %194 = vector.broadcast %173 : vector<1x32xf32> to vector<8x32xf32>
    %195 = arith.mulf %193, %194 : vector<8x32xf32>
    %196 = vector.broadcast %175 : vector<1x32xf32> to vector<8x32xf32>
    %197 = arith.addf %195, %196 : vector<8x32xf32>
    %c0_78 = arith.constant 0 : index
    %c0_79 = arith.constant 0 : index
    %198 = vector.load %arg18[%c0_78, %c0_79] : memref<8x32xf32, #tpu.memory_space<vmem>>, vector<8x32xf32>
    tpu.vector_store %arg18[%c0_78, %c0_79], %197 {strides = array<i32>} : memref<8x32xf32, #tpu.memory_space<vmem>>, vector<8x32xf32>,
    %c1_i32 = arith.constant 1 : i32
    %199 = arith.cmpi eq, %arg1, %c1_i32 : i32
    %200 = arith.extui %199 : i1 to i32
    %c0_i32_80 = arith.constant 0 : i32
    %201 = arith.cmpi ne, %200, %c0_i32_80 : i32
    scf.if %201 {
      %c0_81 = arith.constant 0 : index
      %c0_82 = arith.constant 0 : index
      %202 = vector.load %arg17[%c0_81, %c0_82] : memref<8x32xf32, #tpu.memory_space<vmem>>, vector<8x32xf32>
      tpu.vector_store %arg17[%c0_81, %c0_82], %197 {strides = array<i32>} : memref<8x32xf32, #tpu.memory_space<vmem>>, vector<8x32xf32>,
    } else {
    }
    return
  }
  func.func @transform_0(%arg0: i32, %arg1: i32) -> (i32, i32) {
    %c0_i32 = arith.constant 0 : i32
    %c0_i32_0 = arith.constant 0 : i32
    return %arg0, %c0_i32 : i32, i32
  }
  func.func @transform_1(%arg0: i32, %arg1: i32) -> (i32, i32) {
    %c0_i32 = arith.constant 0 : i32
    %c0_i32_0 = arith.constant 0 : i32
    %c0_i32_1 = arith.constant 0 : i32
    return %c0_i32, %c0_i32_0 : i32, i32
  }
  func.func @transform_2(%arg0: i32, %arg1: i32) -> (i32, i32) {
    %c0_i32 = arith.constant 0 : i32
    %c0_i32_0 = arith.constant 0 : i32
    return %arg0, %c0_i32 : i32, i32
  }
  func.func @transform_3(%arg0: i32, %arg1: i32) -> (i32, i32, i32) {
    %c0_i32 = arith.constant 0 : i32
    %c0_i32_0 = arith.constant 0 : i32
    %c0_i32_1 = arith.constant 0 : i32
    return %arg1, %c0_i32, %c0_i32_0 : i32, i32, i32
  }
  func.func @transform_4(%arg0: i32, %arg1: i32) -> (i32, i32, i32) {
    %c0_i32 = arith.constant 0 : i32
    %c0_i32_0 = arith.constant 0 : i32
    %c0_i32_1 = arith.constant 0 : i32
    return %arg1, %c0_i32, %c0_i32_0 : i32, i32, i32
  }
  func.func @transform_5(%arg0: i32, %arg1: i32) -> (i32, i32, i32) {
    %c0_i32 = arith.constant 0 : i32
    %c0_i32_0 = arith.constant 0 : i32
    %c0_i32_1 = arith.constant 0 : i32
    return %arg1, %c0_i32, %c0_i32_0 : i32, i32, i32
  }
  func.func @transform_6(%arg0: i32, %arg1: i32) -> (i32, i32, i32) {
    %c0_i32 = arith.constant 0 : i32
    %c0_i32_0 = arith.constant 0 : i32
    %c0_i32_1 = arith.constant 0 : i32
    return %arg1, %c0_i32, %c0_i32_0 : i32, i32, i32
  }
  func.func @transform_7(%arg0: i32, %arg1: i32) -> (i32, i32, i32) {
    %c0_i32 = arith.constant 0 : i32
    %c0_i32_0 = arith.constant 0 : i32
    %c0_i32_1 = arith.constant 0 : i32
    return %arg1, %c0_i32, %c0_i32_0 : i32, i32, i32
  }
  func.func @transform_8(%arg0: i32, %arg1: i32) -> (i32, i32, i32) {
    %c0_i32 = arith.constant 0 : i32
    %c0_i32_0 = arith.constant 0 : i32
    %c0_i32_1 = arith.constant 0 : i32
    return %arg1, %c0_i32, %c0_i32_0 : i32, i32, i32
  }
  func.func @transform_9(%arg0: i32, %arg1: i32) -> (i32, i32, i32) {
    %c0_i32 = arith.constant 0 : i32
    %c0_i32_0 = arith.constant 0 : i32
    %c0_i32_1 = arith.constant 0 : i32
    return %arg1, %c0_i32, %c0_i32_0 : i32, i32, i32
  }
  func.func @transform_10(%arg0: i32, %arg1: i32) -> (i32, i32, i32) {
    %c0_i32 = arith.constant 0 : i32
    %c0_i32_0 = arith.constant 0 : i32
    %c0_i32_1 = arith.constant 0 : i32
    return %arg1, %c0_i32, %c0_i32_0 : i32, i32, i32
  }
  func.func @transform_11(%arg0: i32, %arg1: i32) -> (i32, i32, i32) {
    %c0_i32 = arith.constant 0 : i32
    %c0_i32_0 = arith.constant 0 : i32
    %c0_i32_1 = arith.constant 0 : i32
    return %arg1, %c0_i32, %c0_i32_0 : i32, i32, i32
  }
  func.func @transform_12(%arg0: i32, %arg1: i32) -> (i32, i32, i32) {
    %c0_i32 = arith.constant 0 : i32
    %c0_i32_0 = arith.constant 0 : i32
    %c0_i32_1 = arith.constant 0 : i32
    return %arg1, %c0_i32, %c0_i32_0 : i32, i32, i32
  }
  func.func @transform_13(%arg0: i32, %arg1: i32) -> (i32, i32, i32) {
    %c0_i32 = arith.constant 0 : i32
    %c0_i32_0 = arith.constant 0 : i32
    %c0_i32_1 = arith.constant 0 : i32
    return %arg1, %c0_i32, %c0_i32_0 : i32, i32, i32
  }
  func.func @transform_14(%arg0: i32, %arg1: i32) -> (i32, i32, i32) {
    %c0_i32 = arith.constant 0 : i32
    %c0_i32_0 = arith.constant 0 : i32
    %c0_i32_1 = arith.constant 0 : i32
    return %arg1, %c0_i32, %c0_i32_0 : i32, i32, i32
  }
  func.func @transform_15(%arg0: i32, %arg1: i32) -> (i32, i32) {
    %c0_i32 = arith.constant 0 : i32
    %c0_i32_0 = arith.constant 0 : i32
    return %arg0, %c0_i32 : i32, i32
  }
}

</mosaic_0001>

<llo_original>
// kernel: tpu_custom_call.1
$region0: #{tpu_custom_call.1}
  #allocation0 [shape = 'u32[]', space=smem, size = 0x4, offset = 0x4, fixed_abs, tag = 'smem constant byte address 0x4 - core index']
  #allocation1 [shape = 'u32[144,128]{1,0:T(1,128)}', space=vmem, size = 0x12000, scoped, tag = 'internal scratch']
  #allocation2 [shape = 'f32[8,32]{1,0:T(8,128)}', space=vmem, size = 0x1000, scoped, tag = 'scratch operand']
  %s0 = inlined_call_operand.vmem [shape: f32[16,8], index: 0, kind: input, shape index: {}]
  %s1 = inlined_call_operand.vmem [shape: bf16[8,32], index: 1, kind: input, shape index: {}]
  %s2 = inlined_call_operand.hbm [shape: f32[16,32], index: 2, kind: input, shape index: {}]
  %s3 = inlined_call_operand.vmem [shape: bf16[2,32,96], index: 3, kind: input, shape index: {}]
  %s4 = inlined_call_operand.vmem [shape: f32[2,1,96], index: 4, kind: input, shape index: {}]
  %s5 = inlined_call_operand.vmem [shape: bf16[2,32,32], index: 5, kind: input, shape index: {}]
  %s6 = inlined_call_operand.vmem [shape: f32[2,1,32], index: 6, kind: input, shape index: {}]
  %s7 = inlined_call_operand.vmem [shape: f32[2,1,32], index: 7, kind: input, shape index: {}]
  %s8 = inlined_call_operand.vmem [shape: f32[2,1,32], index: 8, kind: input, shape index: {}]
  %s9 = inlined_call_operand.vmem [shape: bf16[2,32,64], index: 9, kind: input, shape index: {}]
  %s10 = inlined_call_operand.hbm [shape: f32[2,1,64], index: 10, kind: input, shape index: {}]
  %s11 = inlined_call_operand.vmem [shape: bf16[2,64,32], index: 11, kind: input, shape index: {}]
  %s12 = inlined_call_operand.hbm [shape: f32[2,1,32], index: 12, kind: input, shape index: {}]
  %s13 = inlined_call_operand.vmem [shape: f32[2,1,32], index: 13, kind: input, shape index: {}]
  %s14 = inlined_call_operand.vmem [shape: f32[2,1,32], index: 14, kind: input, shape index: {}]
  %s15 = inlined_call_operand.hbm [shape: f32[16,32], index: 15, kind: output, shape index: {}]
  %s16 = sld [smem:[#allocation0]]
  $region113: #{tpu_custom_call.1} parent=0
    _
  %s18 = ssub.s32 1, %s16
  %s19 = scalar_select 0, %s18, %s16
  $region1: #{tpu_custom_call.1} parent=0
    #allocation3 [shape = 'u8[8192]{0}', space=vmem, size = 0x2000, scoped, tag = 'input window, operand 2']
    #allocation4 [shape = 's32[2]{0}', space=sflag, size = 0x8, scoped, tag = 'scoped memory for tpu_custom_call.1']
    #allocation5 [shape = 's32[2]{0}', space=sflag, size = 0x8, scoped, tag = 'scoped memory for tpu_custom_call.1']
    #allocation6 [shape = 'u8[1024]{0}', space=vmem, size = 0x400, scoped, tag = 'input window, operand 10']
    #allocation7 [shape = 's32[2]{0}', space=sflag, size = 0x8, scoped, tag = 'scoped memory for tpu_custom_call.1']
    #allocation8 [shape = 'u8[1024]{0}', space=vmem, size = 0x400, scoped, tag = 'input window, operand 12']
    #allocation9 [shape = 'u8[8192]{0}', space=vmem, size = 0x2000, scoped, tag = 'output window, operand 0']
    %20 = vsyncpa [#allocation4], 0
    %s21 = scalar_lea.sflag [#allocation4], 1
    %22 = vsyncpa %s21, 0
    %23 = vsyncpa [#allocation7], 0
    %s24 = scalar_lea.sflag [#allocation7], 1
    %25 = vsyncpa %s24, 0
    %26 = vsyncpa [#allocation5], 0
    %s27 = scalar_lea.sflag [#allocation5], 1
    %28 = vsyncpa %s27, 0
    loop: start=0, step=1, limit=6
    $region2: #{tpu_custom_call.1} parent=1 // loop_pre_header
      _
    $region3: #{tpu_custom_call.1} parent=1 // loop_header
      %s30 = sphi 0, %s34
      %p31 = scmp.ge.s32.totalorder %s30, 6
      %s37 = sphi 0, %s49
      %s38 = sphi 0, %s45
      %s39 = sphi 0, %s37
      %s40 = sphi 0, %s38
      %s41 = sphi 0, %s39
      %s42 = sphi 0, %s40
      %s52 = sphi 0, %s54
      %s55 = sphi 0, %s52
      %s56 = sphi 0, %s55
      %s72 = sphi 0, %s56
      %s76 = sphi 0, %s76
      %s78 = sphi 0, %s76
      %s79 = sphi 0, %s78
      %s93 = sphi 0, %s79
      %s99 = sphi 0, %s101
      %s102 = sphi 0, %s99
      %s103 = sphi 0, %s102
      %s119 = sphi 0, %s103
      %s125 = sphi 0, %s127
      %s128 = sphi 0, %s125
      %s129 = sphi 0, %s128
      %s145 = sphi 0, %s129
      %s151 = sphi 0, %s153
      %s154 = sphi 0, %s151
      %s155 = sphi 0, %s154
      %s171 = sphi 0, %s155
      %s177 = sphi 0, %s179
      %s180 = sphi 0, %s177
      %s181 = sphi 0, %s180
      %s197 = sphi 0, %s181
      %s203 = sphi 0, %s205
      %s206 = sphi 0, %s203
      %s207 = sphi 0, %s206
      %s223 = sphi 0, %s207
      %s229 = sphi 0, %s231
      %s232 = sphi 0, %s229
      %s233 = sphi 0, %s232
      %s249 = sphi 0, %s233
      %s255 = sphi 0, %s257
      %s258 = sphi 0, %s255
      %s259 = sphi 0, %s258
      %s275 = sphi 0, %s259
      %s281 = sphi 0, %s283
      %s284 = sphi 0, %s281
      %s285 = sphi 0, %s284
      %s301 = sphi 0, %s285
      %s307 = sphi 0, %s309
      %s310 = sphi 0, %s307
      %s311 = sphi 0, %s310
      %s327 = sphi 0, %s311
      %s333 = sphi 0, %s335
      %s336 = sphi 0, %s333
      %s337 = sphi 0, %s336
      %s353 = sphi 0, %s337
      %s359 = sphi 0, %s361
      %s362 = sphi 0, %s359
      %s363 = sphi 0, %s362
      %s379 = sphi 0, %s363
      %s385 = sphi 0, %s387
      %s388 = sphi 0, %s385
      %s389 = sphi 0, %s388
      %s405 = sphi 0, %s389
      %s411 = sphi 0, %s413
      %s414 = sphi 0, %s411
      %s415 = sphi 0, %s414
      %s431 = sphi 0, %s415
      %s437 = sphi 0, %s439
      %s440 = sphi 0, %s437
      %s441 = sphi 0, %s440
      %s457 = sphi 0, %s441
    $region4: #{tpu_custom_call.1} parent=1 // loop_header_branch
      %33 = sbr.rel (%p31) target = $region8
    $region5: #{tpu_custom_call.1} parent=1 // loop_body
      %s35 = ssub.s32 %s30, 1
      %s36 = ssub.s32 %s30, 2
      %s43 = sadd.s32 1, %s38
      %p44 = scmp.ge.s32.totalorder %s43, 2
      %s45 = scalar_select %p44, 0, %s43
      %s46 = sadd.s32 1, %s37
      %s47 = scalar_select %p44, %s46, %s37
      %p48 = scmp.ge.s32.totalorder %s47, 2
      %s49 = scalar_select %p48, 0, %s47
      %s50 = ssub.s32 %s37, %s49
      %p51 = scmp.eq.s32.totalorder %s50, 0
      %s53 = sadd.s32 %s52, 1
      %s54 = scalar_select %p51, %s52, %s53
      %p57 = pneg %p51
      %p58 = scmp.eq.s32.totalorder %s30, 3
      %p59 = por %p57, %p58
      %p60 = scmp.ne.s32.totalorder %s52, %s55
      %p61 = scmp.eq.s32.totalorder %s30, 0
      %p62 = por %p60, %p61
      %p63 = scmp.ne.s32.totalorder %s52, %s55
      %p64 = scmp.eq.s32.totalorder %s35, 3
      %p65 = por %p63, %p64
      %p66 = scmp.ne.s32.totalorder %s55, %s56
      %p67 = scmp.eq.s32.totalorder %s35, 0
      %p68 = por %p66, %p67
      %p69 = scmp.ne.s32.totalorder %s55, %s56
      %p70 = scmp.eq.s32.totalorder %s36, 3
      %p71 = por %p69, %p70
      %p73 = scmp.ne.s32.totalorder %s56, %s72
      %p74 = scmp.eq.s32.totalorder %s36, 0
      %p75 = por %p73, %p74
      %s77 = sadd.s32 %s76, 1
      %p80 = scmp.eq.s32.totalorder %s30, 3
      %p81 = scmp.ne.s32.totalorder %s76, %s78
      %p82 = scmp.eq.s32.totalorder %s30, 0
      %p83 = por %p81, %p82
      %p84 = scmp.ne.s32.totalorder %s76, %s78
      %p85 = scmp.eq.s32.totalorder %s35, 3
      %p86 = por %p84, %p85
      %p87 = scmp.ne.s32.totalorder %s78, %s79
      %p88 = scmp.eq.s32.totalorder %s35, 0
      %p89 = por %p87, %p88
      %p90 = scmp.ne.s32.totalorder %s78, %s79
      %p91 = scmp.eq.s32.totalorder %s36, 3
      %p92 = por %p90, %p91
      %p94 = scmp.ne.s32.totalorder %s79, %s93
      %p95 = scmp.eq.s32.totalorder %s36, 0
      %p96 = por %p94, %p95
      %s97 = ssub.s32 %s37, %s49
      %p98 = scmp.eq.s32.totalorder %s97, 0
      %s100 = sadd.s32 %s99, 1
      %s101 = scalar_select %p98, %s99, %s100
      %p104 = pneg %p98
      %p105 = scmp.eq.s32.totalorder %s30, 3
      %p106 = por %p104, %p105
      %p107 = scmp.ne.s32.totalorder %s99, %s102
      %p108 = scmp.eq.s32.totalorder %s30, 0
      %p109 = por %p107, %p108
      %p110 = scmp.ne.s32.totalorder %s99, %s102
      %p111 = scmp.eq.s32.totalorder %s35, 3
      %p112 = por %p110, %p111
      %p113 = scmp.ne.s32.totalorder %s102, %s103
      %p114 = scmp.eq.s32.totalorder %s35, 0
      %p115 = por %p113, %p114
      %p116 = scmp.ne.s32.totalorder %s102, %s103
      %p117 = scmp.eq.s32.totalorder %s36, 3
      %p118 = por %p116, %p117
      %p120 = scmp.ne.s32.totalorder %s103, %s119
      %p121 = scmp.eq.s32.totalorder %s36, 0
      %p122 = por %p120, %p121
      %s123 = ssub.s32 %s38, %s45
      %p124 = scmp.eq.s32.totalorder %s123, 0
      %s126 = sadd.s32 %s125, 1
      %s127 = scalar_select %p124, %s125, %s126
      %p130 = pneg %p124
      %p131 = scmp.eq.s32.totalorder %s30, 3
      %p132 = por %p130, %p131
      %p133 = scmp.ne.s32.totalorder %s125, %s128
      %p134 = scmp.eq.s32.totalorder %s30, 0
      %p135 = por %p133, %p134
      %p136 = scmp.ne.s32.totalorder %s125, %s128
      %p137 = scmp.eq.s32.totalorder %s35, 3
      %p138 = por %p136, %p137
      %p139 = scmp.ne.s32.totalorder %s128, %s129
      %p140 = scmp.eq.s32.totalorder %s35, 0
      %p141 = por %p139, %p140
      %p142 = scmp.ne.s32.totalorder %s128, %s129
      %p143 = scmp.eq.s32.totalorder %s36, 3
      %p144 = por %p142, %p143
      %p146 = scmp.ne.s32.totalorder %s129, %s145
      %p147 = scmp.eq.s32.totalorder %s36, 0
      %p148 = por %p146, %p147
      %s149 = ssub.s32 %s38, %s45
      %p150 = scmp.eq.s32.totalorder %s149, 0
      %s152 = sadd.s32 %s151, 1
      %s153 = scalar_select %p150, %s151, %s152
      %p156 = pneg %p150
      %p157 = scmp.eq.s32.totalorder %s30, 3
      %p158 = por %p156, %p157
      %p159 = scmp.ne.s32.totalorder %s151, %s154
      %p160 = scmp.eq.s32.totalorder %s30, 0
      %p161 = por %p159, %p160
      %p162 = scmp.ne.s32.totalorder %s151, %s154
      %p163 = scmp.eq.s32.totalorder %s35, 3
      %p164 = por %p162, %p163
      %p165 = scmp.ne.s32.totalorder %s154, %s155
      %p166 = scmp.eq.s32.totalorder %s35, 0
      %p167 = por %p165, %p166
      %p168 = scmp.ne.s32.totalorder %s154, %s155
      %p169 = scmp.eq.s32.totalorder %s36, 3
      %p170 = por %p168, %p169
      %p172 = scmp.ne.s32.totalorder %s155, %s171
      %p173 = scmp.eq.s32.totalorder %s36, 0
      %p174 = por %p172, %p173
      %s175 = ssub.s32 %s38, %s45
      %p176 = scmp.eq.s32.totalorder %s175, 0
      %s178 = sadd.s32 %s177, 1
      %s179 = scalar_select %p176, %s177, %s178
      %p182 = pneg %p176
      %p183 = scmp.eq.s32.totalorder %s30, 3
      %p184 = por %p182, %p183
      %p185 = scmp.ne.s32.totalorder %s177, %s180
      %p186 = scmp.eq.s32.totalorder %s30, 0
      %p187 = por %p185, %p186
      %p188 = scmp.ne.s32.totalorder %s177, %s180
      %p189 = scmp.eq.s32.totalorder %s35, 3
      %p190 = por %p188, %p189
      %p191 = scmp.ne.s32.totalorder %s180, %s181
      %p192 = scmp.eq.s32.totalorder %s35, 0
      %p193 = por %p191, %p192
      %p194 = scmp.ne.s32.totalorder %s180, %s181
      %p195 = scmp.eq.s32.totalorder %s36, 3
      %p196 = por %p194, %p195
      %p198 = scmp.ne.s32.totalorder %s181, %s197
      %p199 = scmp.eq.s32.totalorder %s36, 0
      %p200 = por %p198, %p199
      %s201 = ssub.s32 %s38, %s45
      %p202 = scmp.eq.s32.totalorder %s201, 0
      %s204 = sadd.s32 %s203, 1
      %s205 = scalar_select %p202, %s203, %s204
      %p208 = pneg %p202
      %p209 = scmp.eq.s32.totalorder %s30, 3
      %p210 = por %p208, %p209
      %p211 = scmp.ne.s32.totalorder %s203, %s206
      %p212 = scmp.eq.s32.totalorder %s30, 0
      %p213 = por %p211, %p212
      %p214 = scmp.ne.s32.totalorder %s203, %s206
      %p215 = scmp.eq.s32.totalorder %s35, 3
      %p216 = por %p214, %p215
      %p217 = scmp.ne.s32.totalorder %s206, %s207
      %p218 = scmp.eq.s32.totalorder %s35, 0
      %p219 = por %p217, %p218
      %p220 = scmp.ne.s32.totalorder %s206, %s207
      %p221 = scmp.eq.s32.totalorder %s36, 3
      %p222 = por %p220, %p221
      %p224 = scmp.ne.s32.totalorder %s207, %s223
      %p225 = scmp.eq.s32.totalorder %s36, 0
      %p226 = por %p224, %p225
      %s227 = ssub.s32 %s38, %s45
      %p228 = scmp.eq.s32.totalorder %s227, 0
      %s230 = sadd.s32 %s229, 1
      %s231 = scalar_select %p228, %s229, %s230
      %p234 = pneg %p228
      %p235 = scmp.eq.s32.totalorder %s30, 3
      %p236 = por %p234, %p235
      %p237 = scmp.ne.s32.totalorder %s229, %s232
      %p238 = scmp.eq.s32.totalorder %s30, 0
      %p239 = por %p237, %p238
      %p240 = scmp.ne.s32.totalorder %s229, %s232
      %p241 = scmp.eq.s32.totalorder %s35, 3
      %p242 = por %p240, %p241
      %p243 = scmp.ne.s32.totalorder %s232, %s233
      %p244 = scmp.eq.s32.totalorder %s35, 0
      %p245 = por %p243, %p244
      %p246 = scmp.ne.s32.totalorder %s232, %s233
      %p247 = scmp.eq.s32.totalorder %s36, 3
      %p248 = por %p246, %p247
      %p250 = scmp.ne.s32.totalorder %s233, %s249
      %p251 = scmp.eq.s32.totalorder %s36, 0
      %p252 = por %p250, %p251
      %s253 = ssub.s32 %s38, %s45
      %p254 = scmp.eq.s32.totalorder %s253, 0
      %s256 = sadd.s32 %s255, 1
      %s257 = scalar_select %p254, %s255, %s256
      %p260 = pneg %p254
      %p261 = scmp.eq.s32.totalorder %s30, 3
      %p262 = por %p260, %p261
      %p263 = scmp.ne.s32.totalorder %s255, %s258
      %p264 = scmp.eq.s32.totalorder %s30, 0
      %p265 = por %p263, %p264
      %p266 = scmp.ne.s32.totalorder %s255, %s258
      %p267 = scmp.eq.s32.totalorder %s35, 3
      %p268 = por %p266, %p267
      %p269 = scmp.ne.s32.totalorder %s258, %s259
      %p270 = scmp.eq.s32.totalorder %s35, 0
      %p271 = por %p269, %p270
      %p272 = scmp.ne.s32.totalorder %s258, %s259
      %p273 = scmp.eq.s32.totalorder %s36, 3
      %p274 = por %p272, %p273
      %p276 = scmp.ne.s32.totalorder %s259, %s275
      %p277 = scmp.eq.s32.totalorder %s36, 0
      %p278 = por %p276, %p277
      %s279 = ssub.s32 %s38, %s45
      %p280 = scmp.eq.s32.totalorder %s279, 0
      %s282 = sadd.s32 %s281, 1
      %s283 = scalar_select %p280, %s281, %s282
      %p286 = pneg %p280
      %p287 = scmp.eq.s32.totalorder %s30, 3
      %p288 = por %p286, %p287
      %p289 = scmp.ne.s32.totalorder %s281, %s284
      %p290 = scmp.eq.s32.totalorder %s30, 0
      %p291 = por %p289, %p290
      %p292 = scmp.ne.s32.totalorder %s281, %s284
      %p293 = scmp.eq.s32.totalorder %s35, 3
      %p294 = por %p292, %p293
      %p295 = scmp.ne.s32.totalorder %s284, %s285
      %p296 = scmp.eq.s32.totalorder %s35, 0
      %p297 = por %p295, %p296
      %p298 = scmp.ne.s32.totalorder %s284, %s285
      %p299 = scmp.eq.s32.totalorder %s36, 3
      %p300 = por %p298, %p299
      %p302 = scmp.ne.s32.totalorder %s285, %s301
      %p303 = scmp.eq.s32.totalorder %s36, 0
      %p304 = por %p302, %p303
      %s305 = ssub.s32 %s38, %s45
      %p306 = scmp.eq.s32.totalorder %s305, 0
      %s308 = sadd.s32 %s307, 1
      %s309 = scalar_select %p306, %s307, %s308
      %p312 = pneg %p306
      %p313 = scmp.eq.s32.totalorder %s30, 3
      %p314 = por %p312, %p313
      %p315 = scmp.ne.s32.totalorder %s307, %s310
      %p316 = scmp.eq.s32.totalorder %s30, 0
      %p317 = por %p315, %p316
      %p318 = scmp.ne.s32.totalorder %s307, %s310
      %p319 = scmp.eq.s32.totalorder %s35, 3
      %p320 = por %p318, %p319
      %p321 = scmp.ne.s32.totalorder %s310, %s311
      %p322 = scmp.eq.s32.totalorder %s35, 0
      %p323 = por %p321, %p322
      %p324 = scmp.ne.s32.totalorder %s310, %s311
      %p325 = scmp.eq.s32.totalorder %s36, 3
      %p326 = por %p324, %p325
      %p328 = scmp.ne.s32.totalorder %s311, %s327
      %p329 = scmp.eq.s32.totalorder %s36, 0
      %p330 = por %p328, %p329
      %s331 = ssub.s32 %s38, %s45
      %p332 = scmp.eq.s32.totalorder %s331, 0
      %s334 = sadd.s32 %s333, 1
      %s335 = scalar_select %p332, %s333, %s334
      %p338 = pneg %p332
      %p339 = scmp.eq.s32.totalorder %s30, 3
      %p340 = por %p338, %p339
      %p341 = scmp.ne.s32.totalorder %s333, %s336
      %p342 = scmp.eq.s32.totalorder %s30, 0
      %p343 = por %p341, %p342
      %p344 = scmp.ne.s32.totalorder %s333, %s336
      %p345 = scmp.eq.s32.totalorder %s35, 3
      %p346 = por %p344, %p345
      %p347 = scmp.ne.s32.totalorder %s336, %s337
      %p348 = scmp.eq.s32.totalorder %s35, 0
      %p349 = por %p347, %p348
      %p350 = scmp.ne.s32.totalorder %s336, %s337
      %p351 = scmp.eq.s32.totalorder %s36, 3
      %p352 = por %p350, %p351
      %p354 = scmp.ne.s32.totalorder %s337, %s353
      %p355 = scmp.eq.s32.totalorder %s36, 0
      %p356 = por %p354, %p355
      %s357 = ssub.s32 %s38, %s45
      %p358 = scmp.eq.s32.totalorder %s357, 0
      %s360 = sadd.s32 %s359, 1
      %s361 = scalar_select %p358, %s359, %s360
      %p364 = pneg %p358
      %p365 = scmp.eq.s32.totalorder %s30, 3
      %p366 = por %p364, %p365
      %p367 = scmp.ne.s32.totalorder %s359, %s362
      %p368 = scmp.eq.s32.totalorder %s30, 0
      %p369 = por %p367, %p368
      %p370 = scmp.ne.s32.totalorder %s359, %s362
      %p371 = scmp.eq.s32.totalorder %s35, 3
      %p372 = por %p370, %p371
      %p373 = scmp.ne.s32.totalorder %s362, %s363
      %p374 = scmp.eq.s32.totalorder %s35, 0
      %p375 = por %p373, %p374
      %p376 = scmp.ne.s32.totalorder %s362, %s363
      %p377 = scmp.eq.s32.totalorder %s36, 3
      %p378 = por %p376, %p377
      %p380 = scmp.ne.s32.totalorder %s363, %s379
      %p381 = scmp.eq.s32.totalorder %s36, 0
      %p382 = por %p380, %p381
      %s383 = ssub.s32 %s38, %s45
      %p384 = scmp.eq.s32.totalorder %s383, 0
      %s386 = sadd.s32 %s385, 1
      %s387 = scalar_select %p384, %s385, %s386
      %p390 = pneg %p384
      %p391 = scmp.eq.s32.totalorder %s30, 3
      %p392 = por %p390, %p391
      %p393 = scmp.ne.s32.totalorder %s385, %s388
      %p394 = scmp.eq.s32.totalorder %s30, 0
      %p395 = por %p393, %p394
      %p396 = scmp.ne.s32.totalorder %s385, %s388
      %p397 = scmp.eq.s32.totalorder %s35, 3
      %p398 = por %p396, %p397
      %p399 = scmp.ne.s32.totalorder %s388, %s389
      %p400 = scmp.eq.s32.totalorder %s35, 0
      %p401 = por %p399, %p400
      %p402 = scmp.ne.s32.totalorder %s388, %s389
      %p403 = scmp.eq.s32.totalorder %s36, 3
      %p404 = por %p402, %p403
      %p406 = scmp.ne.s32.totalorder %s389, %s405
      %p407 = scmp.eq.s32.totalorder %s36, 0
      %p408 = por %p406, %p407
      %s409 = ssub.s32 %s38, %s45
      %p410 = scmp.eq.s32.totalorder %s409, 0
      %s412 = sadd.s32 %s411, 1
      %s413 = scalar_select %p410, %s411, %s412
      %p416 = pneg %p410
      %p417 = scmp.eq.s32.totalorder %s30, 3
      %p418 = por %p416, %p417
      %p419 = scmp.ne.s32.totalorder %s411, %s414
      %p420 = scmp.eq.s32.totalorder %s30, 0
      %p421 = por %p419, %p420
      %p422 = scmp.ne.s32.totalorder %s411, %s414
      %p423 = scmp.eq.s32.totalorder %s35, 3
      %p424 = por %p422, %p423
      %p425 = scmp.ne.s32.totalorder %s414, %s415
      %p426 = scmp.eq.s32.totalorder %s35, 0
      %p427 = por %p425, %p426
      %p428 = scmp.ne.s32.totalorder %s414, %s415
      %p429 = scmp.eq.s32.totalorder %s36, 3
      %p430 = por %p428, %p429
      %p432 = scmp.ne.s32.totalorder %s415, %s431
      %p433 = scmp.eq.s32.totalorder %s36, 0
      %p434 = por %p432, %p433
      %s435 = ssub.s32 %s37, %s49
      %p436 = scmp.eq.s32.totalorder %s435, 0
      %s438 = sadd.s32 %s437, 1
      %s439 = scalar_select %p436, %s437, %s438
      %p442 = pneg %p436
      %p443 = scmp.eq.s32.totalorder %s30, 3
      %p444 = por %p442, %p443
      %p445 = scmp.ne.s32.totalorder %s437, %s440
      %p446 = scmp.eq.s32.totalorder %s30, 0
      %p447 = por %p445, %p446
      %p448 = scmp.ne.s32.totalorder %s437, %s440
      %p449 = scmp.eq.s32.totalorder %s35, 3
      %p450 = por %p448, %p449
      %p451 = scmp.ne.s32.totalorder %s440, %s441
      %p452 = scmp.eq.s32.totalorder %s35, 0
      %p453 = por %p451, %p452
      %p454 = scmp.ne.s32.totalorder %s440, %s441
      %p455 = scmp.eq.s32.totalorder %s36, 3
      %p456 = por %p454, %p455
      %p458 = scmp.ne.s32.totalorder %s441, %s457
      %p459 = scmp.eq.s32.totalorder %s36, 0
      %p460 = por %p458, %p459
      %p461 = scmp.le.s32.totalorder 1, %s30
      %p462 = scmp.lt.s32.totalorder %s30, 5
      %p463 = pnand %p461, %p462
      %p464 = pneg %p463
      // Predicated region
      $region9: #{tpu_custom_call.1} parent=5 // pred_check
        _
      $region10: #{tpu_custom_call.1} parent=5 // pred_check_branch
        %466 = sbr.rel (%p463) target = $region12
      $region11: #{tpu_custom_call.1} parent=5 // pred_region
        %s467 = ssub.s32 %s30, 1
        // Predicated region
        $region13: #{tpu_custom_call.1} parent=11 // pred_check
          %p468 = pneg %p89
        $region14: #{tpu_custom_call.1} parent=11 // pred_check_branch
          %470 = sbr.rel (%p468) target = $region16
        $region15: #{tpu_custom_call.1} parent=11 // pred_region
          _
        $region16: #{tpu_custom_call.1} parent=11 // pred_fallthru
          _
      $region12: #{tpu_custom_call.1} parent=5 // pred_fallthru
        _
      %p471 = scmp.lt.s32.totalorder %s30, 4
      // Predicated region
      $region17: #{tpu_custom_call.1} parent=5 // pred_check
        %p472 = pneg %p471
      $region18: #{tpu_custom_call.1} parent=5 // pred_check_branch
        %474 = sbr.rel (%p472) target = $region20
      $region19: #{tpu_custom_call.1} parent=5 // pred_region
        // Predicated region
        $region21: #{tpu_custom_call.1} parent=19 // pred_check
          %p475 = pneg %p62
        $region22: #{tpu_custom_call.1} parent=19 // pred_check_branch
          %477 = sbr.rel (%p475) target = $region24
        $region23: #{tpu_custom_call.1} parent=19 // pred_region
          %p478 = scmp.lt.s32.totalorder %s37, 1
          %s479 = scalar_select %p478, %s37, 1
          %s480 = smul.addr %s479, 8
          %s481 = scalar_lea.vmem %s0, %s480
        $region24: #{tpu_custom_call.1} parent=19 // pred_fallthru
          _
        // Predicated region
        $region25: #{tpu_custom_call.1} parent=19 // pred_check
          %p482 = pneg %p109
        $region26: #{tpu_custom_call.1} parent=19 // pred_check_branch
          %484 = sbr.rel (%p482) target = $region28
        $region27: #{tpu_custom_call.1} parent=19 // pred_region
          %s485 = sand.u32 %s99, 1
          %s486 = scalar_lea.sflag [#allocation4], %s485
          %s487 = sand.u32 %s99, 1
          %s488 = smul.addr %s487, 8
          %s489 = scalar_lea.vmem [#allocation3], %s488
          %s491 = ssub.s32 128, 128
          %492 = vsyncadd %s486, %s491
          %s493 = smul.addr %s37, 128
          %s494 = scalar_lea.hbm %s2, %s493
          %s496 = sshll.u32 %s489, 4
          %s497 = int_to_ptr.vmem [resolvable:$true] %s496
          %499 = dma.hbm_to_vmem [thread:$0]  %s494, 128, %s497, %s486
        $region28: #{tpu_custom_call.1} parent=19 // pred_fallthru
          _
        // Predicated region
        $region29: #{tpu_custom_call.1} parent=19 // pred_check
          %p500 = pneg %p135
        $region30: #{tpu_custom_call.1} parent=19 // pred_check_branch
          %502 = sbr.rel (%p500) target = $region32
        $region31: #{tpu_custom_call.1} parent=19 // pred_region
          %p503 = scmp.lt.s32.totalorder %s38, 1
          %s504 = scalar_select %p503, %s38, 1
          %s505 = smul.addr %s504, 4
          %s506 = smul.addr %s505, 4
          %s507 = scalar_lea.vmem %s3, %s506
        $region32: #{tpu_custom_call.1} parent=19 // pred_fallthru
          _
        // Predicated region
        $region33: #{tpu_custom_call.1} parent=19 // pred_check
          %p508 = pneg %p161
        $region34: #{tpu_custom_call.1} parent=19 // pred_check_branch
          %510 = sbr.rel (%p508) target = $region36
        $region35: #{tpu_custom_call.1} parent=19 // pred_region
          %p511 = scmp.lt.s32.totalorder %s38, 1
          %s512 = scalar_select %p511, %s38, 1
          %s513 = scalar_lea.vmem %s4, %s512
        $region36: #{tpu_custom_call.1} parent=19 // pred_fallthru
          _
        // Predicated region
        $region37: #{tpu_custom_call.1} parent=19 // pred_check
          %p514 = pneg %p187
        $region38: #{tpu_custom_call.1} parent=19 // pred_check_branch
          %516 = sbr.rel (%p514) target = $region40
        $region39: #{tpu_custom_call.1} parent=19 // pred_region
          %p517 = scmp.lt.s32.totalorder %s38, 1
          %s518 = scalar_select %p517, %s38, 1
          %s519 = smul.addr %s518, 4
          %s520 = smul.addr %s519, 4
          %s521 = scalar_lea.vmem %s5, %s520
        $region40: #{tpu_custom_call.1} parent=19 // pred_fallthru
          _
        // Predicated region
        $region41: #{tpu_custom_call.1} parent=19 // pred_check
          %p522 = pneg %p213
        $region42: #{tpu_custom_call.1} parent=19 // pred_check_branch
          %524 = sbr.rel (%p522) target = $region44
        $region43: #{tpu_custom_call.1} parent=19 // pred_region
          %p525 = scmp.lt.s32.totalorder %s38, 1
          %s526 = scalar_select %p525, %s38, 1
          %s527 = scalar_lea.vmem %s6, %s526
        $region44: #{tpu_custom_call.1} parent=19 // pred_fallthru
          _
        // Predicated region
        $region45: #{tpu_custom_call.1} parent=19 // pred_check
          %p528 = pneg %p239
        $region46: #{tpu_custom_call.1} parent=19 // pred_check_branch
          %530 = sbr.rel (%p528) target = $region48
        $region47: #{tpu_custom_call.1} parent=19 // pred_region
          %p531 = scmp.lt.s32.totalorder %s38, 1
          %s532 = scalar_select %p531, %s38, 1
          %s533 = scalar_lea.vmem %s7, %s532
        $region48: #{tpu_custom_call.1} parent=19 // pred_fallthru
          _
        // Predicated region
        $region49: #{tpu_custom_call.1} parent=19 // pred_check
          %p534 = pneg %p265
        $region50: #{tpu_custom_call.1} parent=19 // pred_check_branch
          %536 = sbr.rel (%p534) target = $region52
        $region51: #{tpu_custom_call.1} parent=19 // pred_region
          %p537 = scmp.lt.s32.totalorder %s38, 1
          %s538 = scalar_select %p537, %s38, 1
          %s539 = scalar_lea.vmem %s8, %s538
        $region52: #{tpu_custom_call.1} parent=19 // pred_fallthru
          _
        // Predicated region
        $region53: #{tpu_custom_call.1} parent=19 // pred_check
          %p540 = pneg %p291
        $region54: #{tpu_custom_call.1} parent=19 // pred_check_branch
          %542 = sbr.rel (%p540) target = $region56
        $region55: #{tpu_custom_call.1} parent=19 // pred_region
          %p543 = scmp.lt.s32.totalorder %s38, 1
          %s544 = scalar_select %p543, %s38, 1
          %s545 = smul.addr %s544, 4
          %s546 = smul.addr %s545, 4
          %s547 = scalar_lea.vmem %s9, %s546
        $region56: #{tpu_custom_call.1} parent=19 // pred_fallthru
          _
        // Predicated region
        $region57: #{tpu_custom_call.1} parent=19 // pred_check
          %p548 = pneg %p317
        $region58: #{tpu_custom_call.1} parent=19 // pred_check_branch
          %550 = sbr.rel (%p548) target = $region60
        $region59: #{tpu_custom_call.1} parent=19 // pred_region
          %s551 = sand.u32 %s30, 1
          %s552 = scalar_lea.sflag [#allocation7], %s551
          %s553 = sand.u32 %s307, 1
          %s554 = scalar_lea.vmem [#allocation6], %s553
          %s556 = ssub.s32 16, 16
          %557 = vsyncadd %s552, %s556
          %s558 = smul.addr %s38, 16
          %s559 = scalar_lea.hbm %s10, %s558
          %s561 = sshll.u32 %s554, 4
          %s562 = int_to_ptr.vmem [resolvable:$true] %s561
          %564 = dma.hbm_to_vmem [thread:$0]  %s559, 16, %s562, %s552
        $region60: #{tpu_custom_call.1} parent=19 // pred_fallthru
          _
        // Predicated region
        $region61: #{tpu_custom_call.1} parent=19 // pred_check
          %p565 = pneg %p343
        $region62: #{tpu_custom_call.1} parent=19 // pred_check_branch
          %567 = sbr.rel (%p565) target = $region64
        $region63: #{tpu_custom_call.1} parent=19 // pred_region
          %p568 = scmp.lt.s32.totalorder %s38, 1
          %s569 = scalar_select %p568, %s38, 1
          %s570 = smul.addr %s569, 8
          %s571 = smul.addr %s570, 4
          %s572 = scalar_lea.vmem %s11, %s571
        $region64: #{tpu_custom_call.1} parent=19 // pred_fallthru
          _
        // Predicated region
        $region65: #{tpu_custom_call.1} parent=19 // pred_check
          %p573 = pneg %p369
        $region66: #{tpu_custom_call.1} parent=19 // pred_check_branch
          %575 = sbr.rel (%p573) target = $region68
        $region67: #{tpu_custom_call.1} parent=19 // pred_region
          %s576 = sand.u32 %s30, 1
          %s577 = scalar_lea.sflag [#allocation7], %s576
          %s578 = sand.u32 %s359, 1
          %s579 = scalar_lea.vmem [#allocation8], %s578
          %s581 = ssub.s32 16, 16
          %582 = vsyncadd %s577, %s581
          %s583 = smul.addr %s38, 16
          %s584 = scalar_lea.hbm %s12, %s583
          %s586 = sshll.u32 %s579, 4
          %s587 = int_to_ptr.vmem [resolvable:$true] %s586
          %589 = dma.hbm_to_vmem [thread:$0]  %s584, 16, %s587, %s577
        $region68: #{tpu_custom_call.1} parent=19 // pred_fallthru
          _
        // Predicated region
        $region69: #{tpu_custom_call.1} parent=19 // pred_check
          %p590 = pneg %p395
        $region70: #{tpu_custom_call.1} parent=19 // pred_check_branch
          %592 = sbr.rel (%p590) target = $region72
        $region71: #{tpu_custom_call.1} parent=19 // pred_region
          %p593 = scmp.lt.s32.totalorder %s38, 1
          %s594 = scalar_select %p593, %s38, 1
          %s595 = scalar_lea.vmem %s13, %s594
        $region72: #{tpu_custom_call.1} parent=19 // pred_fallthru
          _
        // Predicated region
        $region73: #{tpu_custom_call.1} parent=19 // pred_check
          %p596 = pneg %p421
        $region74: #{tpu_custom_call.1} parent=19 // pred_check_branch
          %598 = sbr.rel (%p596) target = $region76
        $region75: #{tpu_custom_call.1} parent=19 // pred_region
          %p599 = scmp.lt.s32.totalorder %s38, 1
          %s600 = scalar_select %p599, %s38, 1
          %s601 = scalar_lea.vmem %s14, %s600
        $region76: #{tpu_custom_call.1} parent=19 // pred_fallthru
          _
      $region20: #{tpu_custom_call.1} parent=5 // pred_fallthru
        _
      %p602 = scmp.le.s32.totalorder 1, %s30
      %p603 = scmp.lt.s32.totalorder %s30, 5
      %p604 = pnand %p602, %p603
      %p605 = pneg %p604
      // Predicated region
      $region77: #{tpu_custom_call.1} parent=5 // pred_check
        _
      $region78: #{tpu_custom_call.1} parent=5 // pred_check_branch
        %607 = sbr.rel (%p604) target = $region80
      $region79: #{tpu_custom_call.1} parent=5 // pred_region
        %s608 = ssub.s32 %s30, 1
        %s609 = sand.u32 %s102, 1
        %s610 = scalar_lea.sflag [#allocation4], %s609
        %s611 = sand.u32 %s102, 1
        %s612 = smul.addr %s611, 8
        %s613 = scalar_lea.vmem [#allocation3], %s612
        // Predicated region
        $region81: #{tpu_custom_call.1} parent=79 // pred_check
          %p614 = pneg %p115
        $region82: #{tpu_custom_call.1} parent=79 // pred_check_branch
          %616 = sbr.rel (%p614) target = $region84
        $region83: #{tpu_custom_call.1} parent=79 // pred_region
          %617 = dma.done %s610, 128
        $region84: #{tpu_custom_call.1} parent=79 // pred_fallthru
          _
        %s618 = sand.u32 %s35, 1
        %s619 = scalar_lea.sflag [#allocation7], %s618
        %s620 = sand.u32 %s310, 1
        %s621 = scalar_lea.vmem [#allocation6], %s620
        // Predicated region
        $region85: #{tpu_custom_call.1} parent=79 // pred_check
          %p622 = pneg %p323
        $region86: #{tpu_custom_call.1} parent=79 // pred_check_branch
          %624 = sbr.rel (%p622) target = $region88
        $region87: #{tpu_custom_call.1} parent=79 // pred_region
          %625 = dma.done %s619, 16
        $region88: #{tpu_custom_call.1} parent=79 // pred_fallthru
          _
        %s626 = sand.u32 %s35, 1
        %s627 = scalar_lea.sflag [#allocation7], %s626
        %s628 = sand.u32 %s362, 1
        %s629 = scalar_lea.vmem [#allocation8], %s628
        // Predicated region
        $region89: #{tpu_custom_call.1} parent=79 // pred_check
          %p630 = pneg %p375
        $region90: #{tpu_custom_call.1} parent=79 // pred_check_branch
          %632 = sbr.rel (%p630) target = $region92
        $region91: #{tpu_custom_call.1} parent=79 // pred_region
          %633 = dma.done %s627, 16
        $region92: #{tpu_custom_call.1} parent=79 // pred_fallthru
          _
        %p634 = scmp.lt.s32.totalorder %s39, 1
        %s635 = scalar_select %p634, %s39, 1
        %s636 = smul.addr %s635, 8
        %s637 = scalar_lea.vmem %s0, %s636
        %p638 = pneg %p68
        %p639 = pneg %p65
        %p640 = pneg %p89
        %p641 = pneg %p86
        %s642 = sand.u32 %s102, 1
        %s643 = scalar_lea.sflag [#allocation4], %s642
        %s644 = sand.u32 %s102, 1
        %s645 = smul.addr %s644, 8
        %s646 = scalar_lea.vmem [#allocation3], %s645
        %p647 = pneg %p115
        %p648 = pneg %p112
        %p649 = scmp.lt.s32.totalorder %s40, 1
        %s650 = scalar_select %p649, %s40, 1
        %s651 = smul.addr %s650, 4
        %s652 = smul.addr %s651, 4
        %s653 = scalar_lea.vmem %s3, %s652
        %p654 = pneg %p141
        %p655 = pneg %p138
        %p656 = scmp.lt.s32.totalorder %s40, 1
        %s657 = scalar_select %p656, %s40, 1
        %s658 = scalar_lea.vmem %s4, %s657
        %p659 = pneg %p167
        %p660 = pneg %p164
        %p661 = scmp.lt.s32.totalorder %s40, 1
        %s662 = scalar_select %p661, %s40, 1
        %s663 = smul.addr %s662, 4
        %s664 = smul.addr %s663, 4
        %s665 = scalar_lea.vmem %s5, %s664
        %p666 = pneg %p193
        %p667 = pneg %p190
        %p668 = scmp.lt.s32.totalorder %s40, 1
        %s669 = scalar_select %p668, %s40, 1
        %s670 = scalar_lea.vmem %s6, %s669
        %p671 = pneg %p219
        %p672 = pneg %p216
        %p673 = scmp.lt.s32.totalorder %s40, 1
        %s674 = scalar_select %p673, %s40, 1
        %s675 = scalar_lea.vmem %s7, %s674
        %p676 = pneg %p245
        %p677 = pneg %p242
        %p678 = scmp.lt.s32.totalorder %s40, 1
        %s679 = scalar_select %p678, %s40, 1
        %s680 = scalar_lea.vmem %s8, %s679
        %p681 = pneg %p271
        %p682 = pneg %p268
        %p683 = scmp.lt.s32.totalorder %s40, 1
        %s684 = scalar_select %p683, %s40, 1
        %s685 = smul.addr %s684, 4
        %s686 = smul.addr %s685, 4
        %s687 = scalar_lea.vmem %s9, %s686
        %p688 = pneg %p297
        %p689 = pneg %p294
        %s690 = sand.u32 %s35, 1
        %s691 = scalar_lea.sflag [#allocation7], %s690
        %s692 = sand.u32 %s310, 1
        %s693 = scalar_lea.vmem [#allocation6], %s692
        %p694 = pneg %p323
        %p695 = pneg %p320
        %p696 = scmp.lt.s32.totalorder %s40, 1
        %s697 = scalar_select %p696, %s40, 1
        %s698 = smul.addr %s697, 8
        %s699 = smul.addr %s698, 4
        %s700 = scalar_lea.vmem %s11, %s699
        %p701 = pneg %p349
        %p702 = pneg %p346
        %s703 = sand.u32 %s35, 1
        %s704 = scalar_lea.sflag [#allocation7], %s703
        %s705 = sand.u32 %s362, 1
        %s706 = scalar_lea.vmem [#allocation8], %s705
        %p707 = pneg %p375
        %p708 = pneg %p372
        %p709 = scmp.lt.s32.totalorder %s40, 1
        %s710 = scalar_select %p709, %s40, 1
        %s711 = scalar_lea.vmem %s13, %s710
        %p712 = pneg %p401
        %p713 = pneg %p398
        %p714 = scmp.lt.s32.totalorder %s40, 1
        %s715 = scalar_select %p714, %s40, 1
        %s716 = scalar_lea.vmem %s14, %s715
        %p717 = pneg %p427
        %p718 = pneg %p424
        %p719 = pneg %p453
        %p720 = pneg %p450
        %s721 = sand.u32 %s440, 1
        %s722 = scalar_lea.sflag [#allocation5], %s721
        %s723 = sand.u32 %s440, 1
        %s724 = smul.addr %s723, 8
        %s725 = scalar_lea.vmem [#allocation9], %s724
        %p726 = scmp.lt.s32.totalorder %s39, 1
        %s727 = scalar_select %p726, %s39, 1
        %s728 = smul.addr %s727, 8
        %s729 = scalar_lea.vmem %s0, %s728
        %p730 = scmp.lt.s32.totalorder %s40, 1
        %s731 = scalar_select %p730, %s40, 1
        %s732 = smul.addr %s731, 4
        %s733 = smul.addr %s732, 4
        %s734 = scalar_lea.vmem %s3, %s733
        %p735 = scmp.lt.s32.totalorder %s40, 1
        %s736 = scalar_select %p735, %s40, 1
        %s737 = scalar_lea.vmem %s4, %s736
        %p738 = scmp.lt.s32.totalorder %s40, 1
        %s739 = scalar_select %p738, %s40, 1
        %s740 = smul.addr %s739, 4
        %s741 = smul.addr %s740, 4
        %s742 = scalar_lea.vmem %s5, %s741
        %p743 = scmp.lt.s32.totalorder %s40, 1
        %s744 = scalar_select %p743, %s40, 1
        %s745 = scalar_lea.vmem %s6, %s744
        %p746 = scmp.lt.s32.totalorder %s40, 1
        %s747 = scalar_select %p746, %s40, 1
        %s748 = scalar_lea.vmem %s7, %s747
        %p749 = scmp.lt.s32.totalorder %s40, 1
        %s750 = scalar_select %p749, %s40, 1
        %s751 = scalar_lea.vmem %s8, %s750
        %p752 = scmp.lt.s32.totalorder %s40, 1
        %s753 = scalar_select %p752, %s40, 1
        %s754 = smul.addr %s753, 4
        %s755 = smul.addr %s754, 4
        %s756 = scalar_lea.vmem %s9, %s755
        %p757 = scmp.lt.s32.totalorder %s40, 1
        %s758 = scalar_select %p757, %s40, 1
        %s759 = smul.addr %s758, 8
        %s760 = smul.addr %s759, 4
        %s761 = scalar_lea.vmem %s11, %s760
        %p762 = scmp.lt.s32.totalorder %s40, 1
        %s763 = scalar_select %p762, %s40, 1
        %s764 = scalar_lea.vmem %s13, %s763
        %p765 = scmp.lt.s32.totalorder %s40, 1
        %s766 = scalar_select %p765, %s40, 1
        %s767 = scalar_lea.vmem %s14, %s766
        %p769 = scmp.eq.s32.totalorder %s40, 0
        // Predicated region
        $region93: #{tpu_custom_call.1} parent=79 // pred_check
          %p770 = pneg %p769
        $region94: #{tpu_custom_call.1} parent=79 // pred_check_branch
          %772 = sbr.rel (%p770) target = $region96
        $region95: #{tpu_custom_call.1} parent=79 // pred_region
          %v773 = vld [vmem:[%s729] sm:$0xff]
          %v774 = vpack.c.bf16 %v773, %v773
          %v775 = vld [vmem:[%s1] sm:$0xf]
          %v776 = vld [vmem:[%s613] sm:$0xff]
          %vm777 = vcmask 64512
          %v779 = vsel %vm777, %v774, 0
          %vm781 = vcmask 1043456
          %v783 = vsel %vm781, %v775, 0
          %785 = vmatprep.subr.bf16.mxu0 0
          %786 = vmatpush1.bf16.msra.mxu0 0
          %787 = vmatprep.subr.bf16.mxu0 0
          %788 = vmatpush1.bf16.msra.mxu0 0
          %789 = vmatprep.subr.bf16.mxu0 0
          %790 = vmatpush1.bf16.msra.mxu0 0
          %791 = vmatprep.subr.bf16.mxu0 0
          %792 = vmatpush1.bf16.msra.mxu0 0
          %793 = vmatprep.subr.bf16.mxu0 0
          %794 = vmatpush1.bf16.msra.mxu0 0
          %795 = vmatprep.subr.bf16.mxu0 0
          %796 = vmatpush1.bf16.msra.mxu0 0
          %797 = vmatprep.subr.bf16.mxu0 0
          %798 = vmatpush1.bf16.msra.mxu0 0
          %799 = vmatprep.subr.bf16.mxu0 0
          %800 = vmatpush1.bf16.msra.mxu0 %v783
          %801 = vmatprep.subr.bf16.mxu0 0
          %802 = vmatpush2.bf16.msra.mxu0 0
          %803 = vmatprep.subr.bf16.mxu0 0
          %804 = vmatpush2.bf16.msra.mxu0 0
          %805 = vmatprep.subr.bf16.mxu0 0
          %806 = vmatpush2.bf16.msra.mxu0 0
          %807 = vmatprep.subr.bf16.mxu0 0
          %808 = vmatpush2.bf16.msra.mxu0 0
          %809 = vmatprep.subr.bf16.mxu0 0
          %810 = vmatpush2.bf16.msra.mxu0 0
          %811 = vmatprep.subr.bf16.mxu0 0
          %812 = vmatpush2.bf16.msra.mxu0 0
          %813 = vmatprep.subr.bf16.mxu0 0
          %814 = vmatpush2.bf16.msra.mxu0 0
          %815 = vmatprep.subr.bf16.mxu0 0
          %816 = vmatpush2.bf16.msra.mxu0 0
          %817 = vmatprep.mubr.bf16.mxu0 0
          %818 = vmatmul.mubr.bf16.gmra.mxu0 %v779
          %v819 = vpop.f32.mrf.mxu0
          %v820 = vadd.f32 %v776, %v819
          %v821 = vpop.f32.mrf.mxu0
          %v822 = vpop.f32.mrf.mxu0
          %v823 = vpop.f32.mrf.mxu0
          %824 = vdwg.mxu0
          %vm825 = vcmask 261120
          %826 = vst.msk [vmem:[#allocation2] sm:$0xff] %vm825, %v820
        $region96: #{tpu_custom_call.1} parent=79 // pred_fallthru
          _
        %v827 = vld [vmem:[#allocation2] sm:$0xff]
        %v828 = vpack.c.bf16 %v827, %v827
        %v829 = vld [vmem:[%s734] sm:$0xf]
        %v830 = vld [vmem:[%s734 + $0x4] sm:$0xf]
        %v831 = vld [vmem:[%s734 + $0x8] sm:$0xf]
        %v832 = vld [vmem:[%s734 + $0xc] sm:$0xf]
        %v833 = vld [vmem:[%s737] sm:$0x1]
        %v835 = vlaneseq
        %v836 = vshrl.u32 %v835, 7
        %v837 = vsub.s32 0, %v836
        %v838 = vrot.slane %v833, %v837
        %v844 = vunpack.c.l.b16 %v829
        %v845 = vunpack.c.l.b16 %v830
        %v846 = vunpack.c.l.b16 %v831
        %v847 = vunpack.c.l.b16 %v832
        %v848 = vpack.c.b16 %v845, %v844
        %v849 = vpack.c.b16 %v847, %v846
        %vm852 = vcmask 261120
        %v854 = vsel %vm852, %v828, 0
        %856 = vmatprep.subr.bf16.mxu0 0
        %857 = vmatpush1.bf16.msra.mxu0 0
        %858 = vmatprep.subr.bf16.mxu0 0
        %859 = vmatpush1.bf16.msra.mxu0 0
        %860 = vmatprep.subr.bf16.mxu0 0
        %861 = vmatpush1.bf16.msra.mxu0 0
        %862 = vmatprep.subr.bf16.mxu0 0
        %863 = vmatpush1.bf16.msra.mxu0 0
        %864 = vmatprep.subr.bf16.mxu0 0
        %865 = vmatpush1.bf16.msra.mxu0 0
        %866 = vmatprep.subr.bf16.mxu0 0
        %867 = vmatpush1.bf16.msra.mxu0 0
        %868 = vmatprep.subr.bf16.mxu0 0
        %869 = vmatpush1.bf16.msra.mxu0 %v849
        %870 = vmatprep.subr.bf16.mxu0 0
        %871 = vmatpush1.bf16.msra.mxu0 %v848
        %872 = vmatprep.subr.bf16.mxu0 0
        %873 = vmatpush2.bf16.msra.mxu0 0
        %874 = vmatprep.subr.bf16.mxu0 0
        %875 = vmatpush2.bf16.msra.mxu0 0
        %876 = vmatprep.subr.bf16.mxu0 0
        %877 = vmatpush2.bf16.msra.mxu0 0
        %878 = vmatprep.subr.bf16.mxu0 0
        %879 = vmatpush2.bf16.msra.mxu0 0
        %880 = vmatprep.subr.bf16.mxu0 0
        %881 = vmatpush2.bf16.msra.mxu0 0
        %882 = vmatprep.subr.bf16.mxu0 0
        %883 = vmatpush2.bf16.msra.mxu0 0
        %884 = vmatprep.subr.bf16.mxu0 0
        %885 = vmatpush2.bf16.msra.mxu0 0
        %886 = vmatprep.subr.bf16.mxu0 0
        %887 = vmatpush2.bf16.msra.mxu0 0
        %888 = vmatprep.mubr.bf16.mxu0 0
        %889 = vmatmul.mubr.bf16.gmra.mxu0 %v854
        %v890 = vpop.f32.mrf.mxu0
        %v891 = vadd.f32 %v838, %v890
        %v892 = vpop.f32.mrf.mxu0
        %v893 = vpop.f32.mrf.mxu0
        %v894 = vpop.f32.mrf.mxu0
        %895 = vdwg.mxu0
        %v896 = vpack.c.bf16 %v891, %v891
        %v897 = vld [vmem:[%s742] sm:$0xf]
        %v898 = vld [vmem:[%s742 + $0x4] sm:$0xf]
        %v899 = vld [vmem:[%s742 + $0x8] sm:$0xf]
        %v900 = vld [vmem:[%s742 + $0xc] sm:$0xf]
        %902 = vrot.lane.b32.xlu0 %v896, 96
        %v903 = vpop.permute.xlu0 %902
        %vm904 = vcmask 64512
        %v906 = vsel %vm904, %v896, 0
        %v909 = vsel %vm904, %v903, 0
        %911 = vmatprep.subr.bf16.mxu0 0
        %912 = vmatpush1.bf16.xpose.msra.mxu0 0
        %913 = vmatprep.subr.bf16.mxu0 0
        %914 = vmatpush1.bf16.xpose.msra.mxu0 0
        %915 = vmatprep.subr.bf16.mxu0 0
        %916 = vmatpush1.bf16.xpose.msra.mxu0 0
        %917 = vmatprep.subr.bf16.mxu0 0
        %918 = vmatpush1.bf16.xpose.msra.mxu0 0
        %919 = vmatprep.subr.bf16.mxu0 0
        %920 = vmatpush1.bf16.xpose.msra.mxu0 0
        %921 = vmatprep.subr.bf16.mxu0 0
        %922 = vmatpush1.bf16.xpose.msra.mxu0 0
        %923 = vmatprep.subr.bf16.mxu0 0
        %924 = vmatpush1.bf16.xpose.msra.mxu0 0
        %925 = vmatprep.subr.bf16.mxu0 0
        %926 = vmatpush1.bf16.xpose.msra.mxu0 %v909
        %927 = vmatprep.subr.bf16.mxu0 0
        %928 = vmatpush2.bf16.xpose.msra.mxu0 0
        %929 = vmatprep.subr.bf16.mxu0 0
        %930 = vmatpush2.bf16.xpose.msra.mxu0 0
        %931 = vmatprep.subr.bf16.mxu0 0
        %932 = vmatpush2.bf16.xpose.msra.mxu0 0
        %933 = vmatprep.subr.bf16.mxu0 0
        %934 = vmatpush2.bf16.xpose.msra.mxu0 0
        %935 = vmatprep.subr.bf16.mxu0 0
        %936 = vmatpush2.bf16.xpose.msra.mxu0 0
        %937 = vmatprep.subr.bf16.mxu0 0
        %938 = vmatpush2.bf16.xpose.msra.mxu0 0
        %939 = vmatprep.subr.bf16.mxu0 0
        %940 = vmatpush2.bf16.xpose.msra.mxu0 0
        %941 = vmatprep.subr.bf16.mxu0 0
        %942 = vmatpush2.bf16.xpose.msra.mxu0 0
        %943 = vmatprep.mubr.bf16.mxu0 0
        %944 = vmatmul.mubr.bf16.gmra.mxu0 %v906
        %v945 = vpop.f32.mrf.mxu0
        %v946 = vadd.f32 0.0, %v945
        %v947 = vpop.f32.mrf.mxu0
        %v948 = vpop.f32.mrf.mxu0
        %v949 = vpop.f32.mrf.mxu0
        %950 = vdwg.mxu0
        %v951 = vmul.f32 %v946, 0.35355338
        %v952 = vsel %vm904, %v951, -inf
        %953 = vmax.xlane.f32.xlu0 %v952
        %v954 = vpop.xlane.xlu0 %953
        %v955 = vsub.f32 %v951, %v954
        %v956 = vmul.f32 %v955, 1.442695
        %v957 = vpow.pop %v956
        %v958 = vsel %vm904, %v957, 0.0
        %959 = vadd.xlane.f32.xlu0 %v958
        %v960 = vpop.xlane.xlu0 %959
        %v961 = vrcp.pop %v960
        %v962 = vmul.f32 %v957, %v961
        %v963 = vpack.c.bf16 %v962, %v962
        %964 = vrot.lane.b32.xlu0 %v896, 64
        %v965 = vpop.permute.xlu0 %964
        %v967 = vsel %vm904, %v963, 0
        %vm969 = vcmask 1043456
        %v971 = vsel %vm969, %v965, 0
        %973 = vmatprep.subr.bf16.mxu0 0
        %974 = vmatpush1.bf16.msra.mxu0 0
        %975 = vmatprep.subr.bf16.mxu0 0
        %976 = vmatpush1.bf16.msra.mxu0 0
        %977 = vmatprep.subr.bf16.mxu0 0
        %978 = vmatpush1.bf16.msra.mxu0 0
        %979 = vmatprep.subr.bf16.mxu0 0
        %980 = vmatpush1.bf16.msra.mxu0 0
        %981 = vmatprep.subr.bf16.mxu0 0
        %982 = vmatpush1.bf16.msra.mxu0 0
        %983 = vmatprep.subr.bf16.mxu0 0
        %984 = vmatpush1.bf16.msra.mxu0 0
        %985 = vmatprep.subr.bf16.mxu0 0
        %986 = vmatpush1.bf16.msra.mxu0 0
        %987 = vmatprep.subr.bf16.mxu0 0
        %988 = vmatpush1.bf16.msra.mxu0 %v971
        %989 = vmatprep.subr.bf16.mxu0 0
        %990 = vmatpush2.bf16.msra.mxu0 0
        %991 = vmatprep.subr.bf16.mxu0 0
        %992 = vmatpush2.bf16.msra.mxu0 0
        %993 = vmatprep.subr.bf16.mxu0 0
        %994 = vmatpush2.bf16.msra.mxu0 0
        %995 = vmatprep.subr.bf16.mxu0 0
        %996 = vmatpush2.bf16.msra.mxu0 0
        %997 = vmatprep.subr.bf16.mxu0 0
        %998 = vmatpush2.bf16.msra.mxu0 0
        %999 = vmatprep.subr.bf16.mxu0 0
        %1000 = vmatpush2.bf16.msra.mxu0 0
        %1001 = vmatprep.subr.bf16.mxu0 0
        %1002 = vmatpush2.bf16.msra.mxu0 0
        %1003 = vmatprep.subr.bf16.mxu0 0
        %1004 = vmatpush2.bf16.msra.mxu0 0
        %1005 = vmatprep.mubr.bf16.mxu0 0
        %1006 = vmatmul.mubr.bf16.gmra.mxu0 %v967
        %v1007 = vpop.f32.mrf.mxu0
        %v1008 = vadd.f32 0.0, %v1007
        %v1009 = vpop.f32.mrf.mxu0
        %v1010 = vpop.f32.mrf.mxu0
        %v1011 = vpop.f32.mrf.mxu0
        %1012 = vdwg.mxu0
        %v1013 = vpack.c.bf16 %v1008, %v1008
        %1014 = vrot.lane.b32.xlu0 %v896, 120
        %v1015 = vpop.permute.xlu0 %1014
        %1016 = vrot.lane.b32.xlu0 %v896, 88
        %v1017 = vpop.permute.xlu0 %1016
        %v1019 = vsel %vm904, %v1015, 0
        %v1022 = vsel %vm904, %v1017, 0
        %1024 = vmatprep.subr.bf16.mxu0 0
        %1025 = vmatpush1.bf16.xpose.msra.mxu0 0
        %1026 = vmatprep.subr.bf16.mxu0 0
        %1027 = vmatpush1.bf16.xpose.msra.mxu0 0
        %1028 = vmatprep.subr.bf16.mxu0 0
        %1029 = vmatpush1.bf16.xpose.msra.mxu0 0
        %1030 = vmatprep.subr.bf16.mxu0 0
        %1031 = vmatpush1.bf16.xpose.msra.mxu0 0
        %1032 = vmatprep.subr.bf16.mxu0 0
        %1033 = vmatpush1.bf16.xpose.msra.mxu0 0
        %1034 = vmatprep.subr.bf16.mxu0 0
        %1035 = vmatpush1.bf16.xpose.msra.mxu0 0
        %1036 = vmatprep.subr.bf16.mxu0 0
        %1037 = vmatpush1.bf16.xpose.msra.mxu0 0
        %1038 = vmatprep.subr.bf16.mxu0 0
        %1039 = vmatpush1.bf16.xpose.msra.mxu0 %v1022
        %1040 = vmatprep.subr.bf16.mxu0 0
        %1041 = vmatpush2.bf16.xpose.msra.mxu0 0
        %1042 = vmatprep.subr.bf16.mxu0 0
        %1043 = vmatpush2.bf16.xpose.msra.mxu0 0
        %1044 = vmatprep.subr.bf16.mxu0 0
        %1045 = vmatpush2.bf16.xpose.msra.mxu0 0
        %1046 = vmatprep.subr.bf16.mxu0 0
        %1047 = vmatpush2.bf16.xpose.msra.mxu0 0
        %1048 = vmatprep.subr.bf16.mxu0 0
        %1049 = vmatpush2.bf16.xpose.msra.mxu0 0
        %1050 = vmatprep.subr.bf16.mxu0 0
        %1051 = vmatpush2.bf16.xpose.msra.mxu0 0
        %1052 = vmatprep.subr.bf16.mxu0 0
        %1053 = vmatpush2.bf16.xpose.msra.mxu0 0
        %1054 = vmatprep.subr.bf16.mxu0 0
        %1055 = vmatpush2.bf16.xpose.msra.mxu0 0
        %1056 = vmatprep.mubr.bf16.mxu0 0
        %1057 = vmatmul.mubr.bf16.gmra.mxu0 %v1019
        %v1058 = vpop.f32.mrf.mxu0
        %v1059 = vadd.f32 0.0, %v1058
        %v1060 = vpop.f32.mrf.mxu0
        %v1061 = vpop.f32.mrf.mxu0
        %v1062 = vpop.f32.mrf.mxu0
        %1063 = vdwg.mxu0
        %v1064 = vmul.f32 %v1059, 0.35355338
        %v1065 = vsel %vm904, %v1064, -inf
        %1066 = vmax.xlane.f32.xlu0 %v1065
        %v1067 = vpop.xlane.xlu0 %1066
        %v1068 = vsub.f32 %v1064, %v1067
        %v1069 = vmul.f32 %v1068, 1.442695
        %v1070 = vpow.pop %v1069
        %v1071 = vsel %vm904, %v1070, 0.0
        %1072 = vadd.xlane.f32.xlu0 %v1071
        %v1073 = vpop.xlane.xlu0 %1072
        %v1074 = vrcp.pop %v1073
        %v1075 = vmul.f32 %v1070, %v1074
        %v1076 = vpack.c.bf16 %v1075, %v1075
        %1077 = vrot.lane.b32.xlu0 %v896, 56
        %v1078 = vpop.permute.xlu0 %1077
        %v1080 = vsel %vm904, %v1076, 0
        %v1083 = vsel %vm969, %v1078, 0
        %1085 = vmatprep.subr.bf16.mxu0 0
        %1086 = vmatpush1.bf16.msra.mxu0 0
        %1087 = vmatprep.subr.bf16.mxu0 0
        %1088 = vmatpush1.bf16.msra.mxu0 0
        %1089 = vmatprep.subr.bf16.mxu0 0
        %1090 = vmatpush1.bf16.msra.mxu0 0
        %1091 = vmatprep.subr.bf16.mxu0 0
        %1092 = vmatpush1.bf16.msra.mxu0 0
        %1093 = vmatprep.subr.bf16.mxu0 0
        %1094 = vmatpush1.bf16.msra.mxu0 0
        %1095 = vmatprep.subr.bf16.mxu0 0
        %1096 = vmatpush1.bf16.msra.mxu0 0
        %1097 = vmatprep.subr.bf16.mxu0 0
        %1098 = vmatpush1.bf16.msra.mxu0 0
        %1099 = vmatprep.subr.bf16.mxu0 0
        %1100 = vmatpush1.bf16.msra.mxu0 %v1083
        %1101 = vmatprep.subr.bf16.mxu0 0
        %1102 = vmatpush2.bf16.msra.mxu0 0
        %1103 = vmatprep.subr.bf16.mxu0 0
        %1104 = vmatpush2.bf16.msra.mxu0 0
        %1105 = vmatprep.subr.bf16.mxu0 0
        %1106 = vmatpush2.bf16.msra.mxu0 0
        %1107 = vmatprep.subr.bf16.mxu0 0
        %1108 = vmatpush2.bf16.msra.mxu0 0
        %1109 = vmatprep.subr.bf16.mxu0 0
        %1110 = vmatpush2.bf16.msra.mxu0 0
        %1111 = vmatprep.subr.bf16.mxu0 0
        %1112 = vmatpush2.bf16.msra.mxu0 0
        %1113 = vmatprep.subr.bf16.mxu0 0
        %1114 = vmatpush2.bf16.msra.mxu0 0
        %1115 = vmatprep.subr.bf16.mxu0 0
        %1116 = vmatpush2.bf16.msra.mxu0 0
        %1117 = vmatprep.mubr.bf16.mxu0 0
        %1118 = vmatmul.mubr.bf16.gmra.mxu0 %v1080
        %v1119 = vpop.f32.mrf.mxu0
        %v1120 = vadd.f32 0.0, %v1119
        %v1121 = vpop.f32.mrf.mxu0
        %v1122 = vpop.f32.mrf.mxu0
        %v1123 = vpop.f32.mrf.mxu0
        %1124 = vdwg.mxu0
        %v1125 = vpack.c.bf16 %v1120, %v1120
        %v1127 = vsel %vm904, %v1125, 0
        %v1130 = vsel %vm969, %v898, 0
        %1132 = vmatprep.subr.bf16.mxu0 0
        %1133 = vmatpush1.bf16.msra.mxu0 0
        %1134 = vmatprep.subr.bf16.mxu0 0
        %1135 = vmatpush1.bf16.msra.mxu0 0
        %1136 = vmatprep.subr.bf16.mxu0 0
        %1137 = vmatpush1.bf16.msra.mxu0 0
        %1138 = vmatprep.subr.bf16.mxu0 0
        %1139 = vmatpush1.bf16.msra.mxu0 0
        %1140 = vmatprep.subr.bf16.mxu0 0
        %1141 = vmatpush1.bf16.msra.mxu0 0
        %1142 = vmatprep.subr.bf16.mxu0 0
        %1143 = vmatpush1.bf16.msra.mxu0 0
        %1144 = vmatprep.subr.bf16.mxu0 0
        %1145 = vmatpush1.bf16.msra.mxu0 0
        %1146 = vmatprep.subr.bf16.mxu0 0
        %1147 = vmatpush1.bf16.msra.mxu0 %v1130
        %1148 = vmatprep.subr.bf16.mxu0 0
        %1149 = vmatpush2.bf16.msra.mxu0 0
        %1150 = vmatprep.subr.bf16.mxu0 0
        %1151 = vmatpush2.bf16.msra.mxu0 0
        %1152 = vmatprep.subr.bf16.mxu0 0
        %1153 = vmatpush2.bf16.msra.mxu0 0
        %1154 = vmatprep.subr.bf16.mxu0 0
        %1155 = vmatpush2.bf16.msra.mxu0 0
        %1156 = vmatprep.subr.bf16.mxu0 0
        %1157 = vmatpush2.bf16.msra.mxu0 0
        %1158 = vmatprep.subr.bf16.mxu0 0
        %1159 = vmatpush2.bf16.msra.mxu0 0
        %1160 = vmatprep.subr.bf16.mxu0 0
        %1161 = vmatpush2.bf16.msra.mxu0 0
        %1162 = vmatprep.subr.bf16.mxu0 0
        %1163 = vmatpush2.bf16.msra.mxu0 0
        %1164 = vmatprep.mubr.bf16.mxu0 0
        %1165 = vmatmul.mubr.bf16.gmra.mxu0 %v1127
        %v1166 = vpop.f32.mrf.mxu0
        %v1167 = vadd.f32 0.0, %v1166
        %v1168 = vpop.f32.mrf.mxu0
        %v1169 = vpop.f32.mrf.mxu0
        %v1170 = vpop.f32.mrf.mxu0
        %1171 = vdwg.mxu0
        %v1173 = vsel %vm904, %v1013, 0
        %v1176 = vsel %vm969, %v897, 0
        %1178 = vmatprep.subr.bf16.mxu0 0
        %1179 = vmatpush1.bf16.msra.mxu0 0
        %1180 = vmatprep.subr.bf16.mxu0 0
        %1181 = vmatpush1.bf16.msra.mxu0 0
        %1182 = vmatprep.subr.bf16.mxu0 0
        %1183 = vmatpush1.bf16.msra.mxu0 0
        %1184 = vmatprep.subr.bf16.mxu0 0
        %1185 = vmatpush1.bf16.msra.mxu0 0
        %1186 = vmatprep.subr.bf16.mxu0 0
        %1187 = vmatpush1.bf16.msra.mxu0 0
        %1188 = vmatprep.subr.bf16.mxu0 0
        %1189 = vmatpush1.bf16.msra.mxu0 0
        %1190 = vmatprep.subr.bf16.mxu0 0
        %1191 = vmatpush1.bf16.msra.mxu0 0
        %1192 = vmatprep.subr.bf16.mxu0 0
        %1193 = vmatpush1.bf16.msra.mxu0 %v1176
        %1194 = vmatprep.subr.bf16.mxu0 0
        %1195 = vmatpush2.bf16.msra.mxu0 0
        %1196 = vmatprep.subr.bf16.mxu0 0
        %1197 = vmatpush2.bf16.msra.mxu0 0
        %1198 = vmatprep.subr.bf16.mxu0 0
        %1199 = vmatpush2.bf16.msra.mxu0 0
        %1200 = vmatprep.subr.bf16.mxu0 0
        %1201 = vmatpush2.bf16.msra.mxu0 0
        %1202 = vmatprep.subr.bf16.mxu0 0
        %1203 = vmatpush2.bf16.msra.mxu0 0
        %1204 = vmatprep.subr.bf16.mxu0 0
        %1205 = vmatpush2.bf16.msra.mxu0 0
        %1206 = vmatprep.subr.bf16.mxu0 0
        %1207 = vmatpush2.bf16.msra.mxu0 0
        %1208 = vmatprep.subr.bf16.mxu0 0
        %1209 = vmatpush2.bf16.msra.mxu0 0
        %1210 = vmatprep.mubr.bf16.mxu0 0
        %1211 = vmatmul.mubr.bf16.gmra.mxu0 %v1173
        %v1212 = vpop.f32.mrf.mxu0
        %v1213 = vadd.f32 %v1167, %v1212
        %v1214 = vpop.f32.mrf.mxu0
        %v1215 = vpop.f32.mrf.mxu0
        %v1216 = vpop.f32.mrf.mxu0
        %1217 = vdwg.mxu0
        %1218 = vrot.lane.b32.xlu0 %v896, 112
        %v1219 = vpop.permute.xlu0 %1218
        %1220 = vrot.lane.b32.xlu0 %v896, 80
        %v1221 = vpop.permute.xlu0 %1220
        %v1223 = vsel %vm904, %v1219, 0
        %v1226 = vsel %vm904, %v1221, 0
        %1228 = vmatprep.subr.bf16.mxu0 0
        %1229 = vmatpush1.bf16.xpose.msra.mxu0 0
        %1230 = vmatprep.subr.bf16.mxu0 0
        %1231 = vmatpush1.bf16.xpose.msra.mxu0 0
        %1232 = vmatprep.subr.bf16.mxu0 0
        %1233 = vmatpush1.bf16.xpose.msra.mxu0 0
        %1234 = vmatprep.subr.bf16.mxu0 0
        %1235 = vmatpush1.bf16.xpose.msra.mxu0 0
        %1236 = vmatprep.subr.bf16.mxu0 0
        %1237 = vmatpush1.bf16.xpose.msra.mxu0 0
        %1238 = vmatprep.subr.bf16.mxu0 0
        %1239 = vmatpush1.bf16.xpose.msra.mxu0 0
        %1240 = vmatprep.subr.bf16.mxu0 0
        %1241 = vmatpush1.bf16.xpose.msra.mxu0 0
        %1242 = vmatprep.subr.bf16.mxu0 0
        %1243 = vmatpush1.bf16.xpose.msra.mxu0 %v1226
        %1244 = vmatprep.subr.bf16.mxu0 0
        %1245 = vmatpush2.bf16.xpose.msra.mxu0 0
        %1246 = vmatprep.subr.bf16.mxu0 0
        %1247 = vmatpush2.bf16.xpose.msra.mxu0 0
        %1248 = vmatprep.subr.bf16.mxu0 0
        %1249 = vmatpush2.bf16.xpose.msra.mxu0 0
        %1250 = vmatprep.subr.bf16.mxu0 0
        %1251 = vmatpush2.bf16.xpose.msra.mxu0 0
        %1252 = vmatprep.subr.bf16.mxu0 0
        %1253 = vmatpush2.bf16.xpose.msra.mxu0 0
        %1254 = vmatprep.subr.bf16.mxu0 0
        %1255 = vmatpush2.bf16.xpose.msra.mxu0 0
        %1256 = vmatprep.subr.bf16.mxu0 0
        %1257 = vmatpush2.bf16.xpose.msra.mxu0 0
        %1258 = vmatprep.subr.bf16.mxu0 0
        %1259 = vmatpush2.bf16.xpose.msra.mxu0 0
        %1260 = vmatprep.mubr.bf16.mxu0 0
        %1261 = vmatmul.mubr.bf16.gmra.mxu0 %v1223
        %v1262 = vpop.f32.mrf.mxu0
        %v1263 = vadd.f32 0.0, %v1262
        %v1264 = vpop.f32.mrf.mxu0
        %v1265 = vpop.f32.mrf.mxu0
        %v1266 = vpop.f32.mrf.mxu0
        %1267 = vdwg.mxu0
        %v1268 = vmul.f32 %v1263, 0.35355338
        %v1269 = vsel %vm904, %v1268, -inf
        %1270 = vmax.xlane.f32.xlu0 %v1269
        %v1271 = vpop.xlane.xlu0 %1270
        %v1272 = vsub.f32 %v1268, %v1271
        %v1273 = vmul.f32 %v1272, 1.442695
        %v1274 = vpow.pop %v1273
        %v1275 = vsel %vm904, %v1274, 0.0
        %1276 = vadd.xlane.f32.xlu0 %v1275
        %v1277 = vpop.xlane.xlu0 %1276
        %v1278 = vrcp.pop %v1277
        %v1279 = vmul.f32 %v1274, %v1278
        %v1280 = vpack.c.bf16 %v1279, %v1279
        %1281 = vrot.lane.b32.xlu0 %v896, 48
        %v1282 = vpop.permute.xlu0 %1281
        %v1284 = vsel %vm904, %v1280, 0
        %v1287 = vsel %vm969, %v1282, 0
        %1289 = vmatprep.subr.bf16.mxu0 0
        %1290 = vmatpush1.bf16.msra.mxu0 0
        %1291 = vmatprep.subr.bf16.mxu0 0
        %1292 = vmatpush1.bf16.msra.mxu0 0
        %1293 = vmatprep.subr.bf16.mxu0 0
        %1294 = vmatpush1.bf16.msra.mxu0 0
        %1295 = vmatprep.subr.bf16.mxu0 0
        %1296 = vmatpush1.bf16.msra.mxu0 0
        %1297 = vmatprep.subr.bf16.mxu0 0
        %1298 = vmatpush1.bf16.msra.mxu0 0
        %1299 = vmatprep.subr.bf16.mxu0 0
        %1300 = vmatpush1.bf16.msra.mxu0 0
        %1301 = vmatprep.subr.bf16.mxu0 0
        %1302 = vmatpush1.bf16.msra.mxu0 0
        %1303 = vmatprep.subr.bf16.mxu0 0
        %1304 = vmatpush1.bf16.msra.mxu0 %v1287
        %1305 = vmatprep.subr.bf16.mxu0 0
        %1306 = vmatpush2.bf16.msra.mxu0 0
        %1307 = vmatprep.subr.bf16.mxu0 0
        %1308 = vmatpush2.bf16.msra.mxu0 0
        %1309 = vmatprep.subr.bf16.mxu0 0
        %1310 = vmatpush2.bf16.msra.mxu0 0
        %1311 = vmatprep.subr.bf16.mxu0 0
        %1312 = vmatpush2.bf16.msra.mxu0 0
        %1313 = vmatprep.subr.bf16.mxu0 0
        %1314 = vmatpush2.bf16.msra.mxu0 0
        %1315 = vmatprep.subr.bf16.mxu0 0
        %1316 = vmatpush2.bf16.msra.mxu0 0
        %1317 = vmatprep.subr.bf16.mxu0 0
        %1318 = vmatpush2.bf16.msra.mxu0 0
        %1319 = vmatprep.subr.bf16.mxu0 0
        %1320 = vmatpush2.bf16.msra.mxu0 0
        %1321 = vmatprep.mubr.bf16.mxu0 0
        %1322 = vmatmul.mubr.bf16.gmra.mxu0 %v1284
        %v1323 = vpop.f32.mrf.mxu0
        %v1324 = vadd.f32 0.0, %v1323
        %v1325 = vpop.f32.mrf.mxu0
        %v1326 = vpop.f32.mrf.mxu0
        %v1327 = vpop.f32.mrf.mxu0
        %1328 = vdwg.mxu0
        %v1329 = vpack.c.bf16 %v1324, %v1324
        %v1331 = vsel %vm904, %v1329, 0
        %v1334 = vsel %vm969, %v899, 0
        %1336 = vmatprep.subr.bf16.mxu0 0
        %1337 = vmatpush1.bf16.msra.mxu0 0
        %1338 = vmatprep.subr.bf16.mxu0 0
        %1339 = vmatpush1.bf16.msra.mxu0 0
        %1340 = vmatprep.subr.bf16.mxu0 0
        %1341 = vmatpush1.bf16.msra.mxu0 0
        %1342 = vmatprep.subr.bf16.mxu0 0
        %1343 = vmatpush1.bf16.msra.mxu0 0
        %1344 = vmatprep.subr.bf16.mxu0 0
        %1345 = vmatpush1.bf16.msra.mxu0 0
        %1346 = vmatprep.subr.bf16.mxu0 0
        %1347 = vmatpush1.bf16.msra.mxu0 0
        %1348 = vmatprep.subr.bf16.mxu0 0
        %1349 = vmatpush1.bf16.msra.mxu0 0
        %1350 = vmatprep.subr.bf16.mxu0 0
        %1351 = vmatpush1.bf16.msra.mxu0 %v1334
        %1352 = vmatprep.subr.bf16.mxu0 0
        %1353 = vmatpush2.bf16.msra.mxu0 0
        %1354 = vmatprep.subr.bf16.mxu0 0
        %1355 = vmatpush2.bf16.msra.mxu0 0
        %1356 = vmatprep.subr.bf16.mxu0 0
        %1357 = vmatpush2.bf16.msra.mxu0 0
        %1358 = vmatprep.subr.bf16.mxu0 0
        %1359 = vmatpush2.bf16.msra.mxu0 0
        %1360 = vmatprep.subr.bf16.mxu0 0
        %1361 = vmatpush2.bf16.msra.mxu0 0
        %1362 = vmatprep.subr.bf16.mxu0 0
        %1363 = vmatpush2.bf16.msra.mxu0 0
        %1364 = vmatprep.subr.bf16.mxu0 0
        %1365 = vmatpush2.bf16.msra.mxu0 0
        %1366 = vmatprep.subr.bf16.mxu0 0
        %1367 = vmatpush2.bf16.msra.mxu0 0
        %1368 = vmatprep.mubr.bf16.mxu0 0
        %1369 = vmatmul.mubr.bf16.gmra.mxu0 %v1331
        %v1370 = vpop.f32.mrf.mxu0
        %v1371 = vadd.f32 0.0, %v1370
        %v1372 = vpop.f32.mrf.mxu0
        %v1373 = vpop.f32.mrf.mxu0
        %v1374 = vpop.f32.mrf.mxu0
        %1375 = vdwg.mxu0
        %v1376 = vadd.f32 %v1213, %v1371
        %1377 = vrot.lane.b32.xlu0 %v896, 104
        %v1378 = vpop.permute.xlu0 %1377
        %1379 = vrot.lane.b32.xlu0 %v896, 72
        %v1380 = vpop.permute.xlu0 %1379
        %v1382 = vsel %vm904, %v1378, 0
        %v1385 = vsel %vm904, %v1380, 0
        %1387 = vmatprep.subr.bf16.mxu0 0
        %1388 = vmatpush1.bf16.xpose.msra.mxu0 0
        %1389 = vmatprep.subr.bf16.mxu0 0
        %1390 = vmatpush1.bf16.xpose.msra.mxu0 0
        %1391 = vmatprep.subr.bf16.mxu0 0
        %1392 = vmatpush1.bf16.xpose.msra.mxu0 0
        %1393 = vmatprep.subr.bf16.mxu0 0
        %1394 = vmatpush1.bf16.xpose.msra.mxu0 0
        %1395 = vmatprep.subr.bf16.mxu0 0
        %1396 = vmatpush1.bf16.xpose.msra.mxu0 0
        %1397 = vmatprep.subr.bf16.mxu0 0
        %1398 = vmatpush1.bf16.xpose.msra.mxu0 0
        %1399 = vmatprep.subr.bf16.mxu0 0
        %1400 = vmatpush1.bf16.xpose.msra.mxu0 0
        %1401 = vmatprep.subr.bf16.mxu0 0
        %1402 = vmatpush1.bf16.xpose.msra.mxu0 %v1385
        %1403 = vmatprep.subr.bf16.mxu0 0
        %1404 = vmatpush2.bf16.xpose.msra.mxu0 0
        %1405 = vmatprep.subr.bf16.mxu0 0
        %1406 = vmatpush2.bf16.xpose.msra.mxu0 0
        %1407 = vmatprep.subr.bf16.mxu0 0
        %1408 = vmatpush2.bf16.xpose.msra.mxu0 0
        %1409 = vmatprep.subr.bf16.mxu0 0
        %1410 = vmatpush2.bf16.xpose.msra.mxu0 0
        %1411 = vmatprep.subr.bf16.mxu0 0
        %1412 = vmatpush2.bf16.xpose.msra.mxu0 0
        %1413 = vmatprep.subr.bf16.mxu0 0
        %1414 = vmatpush2.bf16.xpose.msra.mxu0 0
        %1415 = vmatprep.subr.bf16.mxu0 0
        %1416 = vmatpush2.bf16.xpose.msra.mxu0 0
        %1417 = vmatprep.subr.bf16.mxu0 0
        %1418 = vmatpush2.bf16.xpose.msra.mxu0 0
        %1419 = vmatprep.mubr.bf16.mxu0 0
        %1420 = vmatmul.mubr.bf16.gmra.mxu0 %v1382
        %v1421 = vpop.f32.mrf.mxu0
        %v1422 = vadd.f32 0.0, %v1421
        %v1423 = vpop.f32.mrf.mxu0
        %v1424 = vpop.f32.mrf.mxu0
        %v1425 = vpop.f32.mrf.mxu0
        %1426 = vdwg.mxu0
        %v1427 = vmul.f32 %v1422, 0.35355338
        %v1428 = vsel %vm904, %v1427, -inf
        %1429 = vmax.xlane.f32.xlu0 %v1428
        %v1430 = vpop.xlane.xlu0 %1429
        %v1431 = vsub.f32 %v1427, %v1430
        %v1432 = vmul.f32 %v1431, 1.442695
        %v1433 = vpow.pop %v1432
        %v1434 = vsel %vm904, %v1433, 0.0
        %1435 = vadd.xlane.f32.xlu0 %v1434
        %v1436 = vpop.xlane.xlu0 %1435
        %v1437 = vrcp.pop %v1436
        %v1438 = vmul.f32 %v1433, %v1437
        %v1439 = vpack.c.bf16 %v1438, %v1438
        %1440 = vrot.lane.b32.xlu0 %v896, 40
        %v1441 = vpop.permute.xlu0 %1440
        %v1443 = vsel %vm904, %v1439, 0
        %v1446 = vsel %vm969, %v1441, 0
        %1448 = vmatprep.subr.bf16.mxu0 0
        %1449 = vmatpush1.bf16.msra.mxu0 0
        %1450 = vmatprep.subr.bf16.mxu0 0
        %1451 = vmatpush1.bf16.msra.mxu0 0
        %1452 = vmatprep.subr.bf16.mxu0 0
        %1453 = vmatpush1.bf16.msra.mxu0 0
        %1454 = vmatprep.subr.bf16.mxu0 0
        %1455 = vmatpush1.bf16.msra.mxu0 0
        %1456 = vmatprep.subr.bf16.mxu0 0
        %1457 = vmatpush1.bf16.msra.mxu0 0
        %1458 = vmatprep.subr.bf16.mxu0 0
        %1459 = vmatpush1.bf16.msra.mxu0 0
        %1460 = vmatprep.subr.bf16.mxu0 0
        %1461 = vmatpush1.bf16.msra.mxu0 0
        %1462 = vmatprep.subr.bf16.mxu0 0
        %1463 = vmatpush1.bf16.msra.mxu0 %v1446
        %1464 = vmatprep.subr.bf16.mxu0 0
        %1465 = vmatpush2.bf16.msra.mxu0 0
        %1466 = vmatprep.subr.bf16.mxu0 0
        %1467 = vmatpush2.bf16.msra.mxu0 0
        %1468 = vmatprep.subr.bf16.mxu0 0
        %1469 = vmatpush2.bf16.msra.mxu0 0
        %1470 = vmatprep.subr.bf16.mxu0 0
        %1471 = vmatpush2.bf16.msra.mxu0 0
        %1472 = vmatprep.subr.bf16.mxu0 0
        %1473 = vmatpush2.bf16.msra.mxu0 0
        %1474 = vmatprep.subr.bf16.mxu0 0
        %1475 = vmatpush2.bf16.msra.mxu0 0
        %1476 = vmatprep.subr.bf16.mxu0 0
        %1477 = vmatpush2.bf16.msra.mxu0 0
        %1478 = vmatprep.subr.bf16.mxu0 0
        %1479 = vmatpush2.bf16.msra.mxu0 0
        %1480 = vmatprep.mubr.bf16.mxu0 0
        %1481 = vmatmul.mubr.bf16.gmra.mxu0 %v1443
        %v1482 = vpop.f32.mrf.mxu0
        %v1483 = vadd.f32 0.0, %v1482
        %v1484 = vpop.f32.mrf.mxu0
        %v1485 = vpop.f32.mrf.mxu0
        %v1486 = vpop.f32.mrf.mxu0
        %1487 = vdwg.mxu0
        %v1488 = vpack.c.bf16 %v1483, %v1483
        %v1490 = vsel %vm904, %v1488, 0
        %v1493 = vsel %vm969, %v900, 0
        %1495 = vmatprep.subr.bf16.mxu0 0
        %1496 = vmatpush1.bf16.msra.mxu0 0
        %1497 = vmatprep.subr.bf16.mxu0 0
        %1498 = vmatpush1.bf16.msra.mxu0 0
        %1499 = vmatprep.subr.bf16.mxu0 0
        %1500 = vmatpush1.bf16.msra.mxu0 0
        %1501 = vmatprep.subr.bf16.mxu0 0
        %1502 = vmatpush1.bf16.msra.mxu0 0
        %1503 = vmatprep.subr.bf16.mxu0 0
        %1504 = vmatpush1.bf16.msra.mxu0 0
        %1505 = vmatprep.subr.bf16.mxu0 0
        %1506 = vmatpush1.bf16.msra.mxu0 0
        %1507 = vmatprep.subr.bf16.mxu0 0
        %1508 = vmatpush1.bf16.msra.mxu0 0
        %1509 = vmatprep.subr.bf16.mxu0 0
        %1510 = vmatpush1.bf16.msra.mxu0 %v1493
        %1511 = vmatprep.subr.bf16.mxu0 0
        %1512 = vmatpush2.bf16.msra.mxu0 0
        %1513 = vmatprep.subr.bf16.mxu0 0
        %1514 = vmatpush2.bf16.msra.mxu0 0
        %1515 = vmatprep.subr.bf16.mxu0 0
        %1516 = vmatpush2.bf16.msra.mxu0 0
        %1517 = vmatprep.subr.bf16.mxu0 0
        %1518 = vmatpush2.bf16.msra.mxu0 0
        %1519 = vmatprep.subr.bf16.mxu0 0
        %1520 = vmatpush2.bf16.msra.mxu0 0
        %1521 = vmatprep.subr.bf16.mxu0 0
        %1522 = vmatpush2.bf16.msra.mxu0 0
        %1523 = vmatprep.subr.bf16.mxu0 0
        %1524 = vmatpush2.bf16.msra.mxu0 0
        %1525 = vmatprep.subr.bf16.mxu0 0
        %1526 = vmatpush2.bf16.msra.mxu0 0
        %1527 = vmatprep.mubr.bf16.mxu0 0
        %1528 = vmatmul.mubr.bf16.gmra.mxu0 %v1490
        %v1529 = vpop.f32.mrf.mxu0
        %v1530 = vadd.f32 0.0, %v1529
        %v1531 = vpop.f32.mrf.mxu0
        %v1532 = vpop.f32.mrf.mxu0
        %v1533 = vpop.f32.mrf.mxu0
        %1534 = vdwg.mxu0
        %v1535 = vadd.f32 %v1376, %v1530
        %v1536 = vld [vmem:[%s745] sm:$0x1]
        %v1538 = vlaneseq
        %v1539 = vshrl.u32 %v1538, 7
        %v1540 = vsub.s32 0, %v1539
        %v1541 = vrot.slane %v1536, %v1540
        %v1543 = vadd.f32 %v1535, %v1541
        %v1544 = vadd.f32 %v827, %v1543
        %v1545 = vld [vmem:[%s748] sm:$0x1]
        %v1546 = vld [vmem:[%s751] sm:$0x1]
        %v1547 = vsel %vm852, %v1544, 0.0
        %1548 = vadd.xlane.f32.xlu0 %v1547
        %v1549 = vpop.xlane.xlu0 %1548
        %v1550 = vrcp.pop 32.0
        %v1551 = vmul.f32 %v1549, %v1550
        %v1552 = vsub.f32 %v1544, %v1551
        %v1553 = vmul.f32 %v1552, %v1552
        %v1554 = vsel %vm852, %v1553, 0.0
        %1555 = vadd.xlane.f32.xlu0 %v1554
        %v1556 = vpop.xlane.xlu0 %1555
        %v1557 = vmul.f32 %v1556, %v1550
        %v1558 = vadd.f32 %v1557, 1e-05
        %v1559 = vrsqrt.pop %v1558
        %v1560 = vmul.f32 %v1552, %v1559
        %v1562 = vlaneseq
        %v1563 = vshrl.u32 %v1562, 7
        %v1564 = vsub.s32 0, %v1563
        %v1565 = vrot.slane %v1545, %v1564
        %v1567 = vmul.f32 %v1560, %v1565
        %v1569 = vlaneseq
        %v1570 = vshrl.u32 %v1569, 7
        %v1571 = vsub.s32 0, %v1570
        %v1572 = vrot.slane %v1546, %v1571
        %v1574 = vadd.f32 %v1567, %v1572
        %v1575 = vpack.c.bf16 %v1574, %v1574
        %v1576 = vld [vmem:[%s756] sm:$0xf]
        %v1577 = vld [vmem:[%s756 + $0x4] sm:$0xf]
        %v1578 = vld [vmem:[%s756 + $0x8] sm:$0xf]
        %v1579 = vld [vmem:[%s756 + $0xc] sm:$0xf]
        %v1580 = vld [vmem:[%s621] sm:$0x1]
        %v1582 = vlaneseq
        %v1583 = vshrl.u32 %v1582, 7
        %v1584 = vsub.s32 0, %v1583
        %v1585 = vrot.slane %v1580, %v1584
        %v1591 = vunpack.c.l.b16 %v1576
        %v1592 = vunpack.c.l.b16 %v1577
        %v1593 = vunpack.c.l.b16 %v1578
        %v1594 = vunpack.c.l.b16 %v1579
        %v1595 = vpack.c.b16 %v1592, %v1591
        %v1596 = vpack.c.b16 %v1594, %v1593
        %v1600 = vsel %vm852, %v1575, 0
        %1602 = vmatprep.subr.bf16.mxu0 0
        %1603 = vmatpush1.bf16.msra.mxu0 0
        %1604 = vmatprep.subr.bf16.mxu0 0
        %1605 = vmatpush1.bf16.msra.mxu0 0
        %1606 = vmatprep.subr.bf16.mxu0 0
        %1607 = vmatpush1.bf16.msra.mxu0 0
        %1608 = vmatprep.subr.bf16.mxu0 0
        %1609 = vmatpush1.bf16.msra.mxu0 0
        %1610 = vmatprep.subr.bf16.mxu0 0
        %1611 = vmatpush1.bf16.msra.mxu0 0
        %1612 = vmatprep.subr.bf16.mxu0 0
        %1613 = vmatpush1.bf16.msra.mxu0 0
        %1614 = vmatprep.subr.bf16.mxu0 0
        %1615 = vmatpush1.bf16.msra.mxu0 %v1596
        %1616 = vmatprep.subr.bf16.mxu0 0
        %1617 = vmatpush1.bf16.msra.mxu0 %v1595
        %1618 = vmatprep.subr.bf16.mxu0 0
        %1619 = vmatpush2.bf16.msra.mxu0 0
        %1620 = vmatprep.subr.bf16.mxu0 0
        %1621 = vmatpush2.bf16.msra.mxu0 0
        %1622 = vmatprep.subr.bf16.mxu0 0
        %1623 = vmatpush2.bf16.msra.mxu0 0
        %1624 = vmatprep.subr.bf16.mxu0 0
        %1625 = vmatpush2.bf16.msra.mxu0 0
        %1626 = vmatprep.subr.bf16.mxu0 0
        %1627 = vmatpush2.bf16.msra.mxu0 0
        %1628 = vmatprep.subr.bf16.mxu0 0
        %1629 = vmatpush2.bf16.msra.mxu0 0
        %1630 = vmatprep.subr.bf16.mxu0 0
        %1631 = vmatpush2.bf16.msra.mxu0 0
        %1632 = vmatprep.subr.bf16.mxu0 0
        %1633 = vmatpush2.bf16.msra.mxu0 0
        %1634 = vmatprep.mubr.bf16.mxu0 0
        %1635 = vmatmul.mubr.bf16.gmra.mxu0 %v1600
        %v1636 = vpop.f32.mrf.mxu0
        %v1637 = vadd.f32 %v1585, %v1636
        %v1638 = vpop.f32.mrf.mxu0
        %v1639 = vpop.f32.mrf.mxu0
        %v1640 = vpop.f32.mrf.mxu0
        %1641 = vdwg.mxu0
        %v1642 = vmul.f32 %v1637, 0.5
        %v1643 = vmul.f32 %v1637, 0.70710677
        %v1644 = verf.f32.pop %v1643
        %v1645 = vadd.f32 %v1644, 1.0
        %v1646 = vmul.f32 %v1642, %v1645
        %v1647 = vpack.c.bf16 %v1646, %v1646
        %v1648 = vld [vmem:[%s761] sm:$0xf]
        %v1649 = vld [vmem:[%s761 + $0x4] sm:$0xf]
        %v1650 = vld [vmem:[%s761 + $0x8] sm:$0xf]
        %v1651 = vld [vmem:[%s761 + $0xc] sm:$0xf]
        %v1652 = vld [vmem:[%s761 + $0x10] sm:$0xf]
        %v1653 = vld [vmem:[%s761 + $0x14] sm:$0xf]
        %v1654 = vld [vmem:[%s761 + $0x18] sm:$0xf]
        %v1655 = vld [vmem:[%s761 + $0x1c] sm:$0xf]
        %v1656 = vld [vmem:[%s629] sm:$0x1]
        %v1658 = vlaneseq
        %v1659 = vshrl.u32 %v1658, 7
        %v1660 = vsub.s32 0, %v1659
        %v1661 = vrot.slane %v1656, %v1660
        %v1671 = vunpack.c.l.b16 %v1648
        %v1672 = vunpack.c.l.b16 %v1649
        %v1673 = vunpack.c.l.b16 %v1650
        %v1674 = vunpack.c.l.b16 %v1651
        %v1675 = vunpack.c.l.b16 %v1652
        %v1676 = vunpack.c.l.b16 %v1653
        %v1677 = vunpack.c.l.b16 %v1654
        %v1678 = vunpack.c.l.b16 %v1655
        %v1679 = vpack.c.b16 %v1672, %v1671
        %v1680 = vpack.c.b16 %v1674, %v1673
        %v1681 = vpack.c.b16 %v1676, %v1675
        %v1682 = vpack.c.b16 %v1678, %v1677
        %vm1687 = vcmask 523264
        %v1689 = vsel %vm1687, %v1647, 0
        %1691 = vmatprep.subr.bf16.mxu0 0
        %1692 = vmatpush1.bf16.msra.mxu0 0
        %1693 = vmatprep.subr.bf16.mxu0 0
        %1694 = vmatpush1.bf16.msra.mxu0 0
        %1695 = vmatprep.subr.bf16.mxu0 0
        %1696 = vmatpush1.bf16.msra.mxu0 0
        %1697 = vmatprep.subr.bf16.mxu0 0
        %1698 = vmatpush1.bf16.msra.mxu0 0
        %1699 = vmatprep.subr.bf16.mxu0 0
        %1700 = vmatpush1.bf16.msra.mxu0 %v1682
        %1701 = vmatprep.subr.bf16.mxu0 0
        %1702 = vmatpush1.bf16.msra.mxu0 %v1681
        %1703 = vmatprep.subr.bf16.mxu0 0
        %1704 = vmatpush1.bf16.msra.mxu0 %v1680
        %1705 = vmatprep.subr.bf16.mxu0 0
        %1706 = vmatpush1.bf16.msra.mxu0 %v1679
        %1707 = vmatprep.subr.bf16.mxu0 0
        %1708 = vmatpush2.bf16.msra.mxu0 0
        %1709 = vmatprep.subr.bf16.mxu0 0
        %1710 = vmatpush2.bf16.msra.mxu0 0
        %1711 = vmatprep.subr.bf16.mxu0 0
        %1712 = vmatpush2.bf16.msra.mxu0 0
        %1713 = vmatprep.subr.bf16.mxu0 0
        %1714 = vmatpush2.bf16.msra.mxu0 0
        %1715 = vmatprep.subr.bf16.mxu0 0
        %1716 = vmatpush2.bf16.msra.mxu0 0
        %1717 = vmatprep.subr.bf16.mxu0 0
        %1718 = vmatpush2.bf16.msra.mxu0 0
        %1719 = vmatprep.subr.bf16.mxu0 0
        %1720 = vmatpush2.bf16.msra.mxu0 0
        %1721 = vmatprep.subr.bf16.mxu0 0
        %1722 = vmatpush2.bf16.msra.mxu0 0
        %1723 = vmatprep.mubr.bf16.mxu0 0
        %1724 = vmatmul.mubr.bf16.gmra.mxu0 %v1689
        %v1725 = vpop.f32.mrf.mxu0
        %v1726 = vadd.f32 %v1661, %v1725
        %v1727 = vpop.f32.mrf.mxu0
        %v1728 = vpop.f32.mrf.mxu0
        %v1729 = vpop.f32.mrf.mxu0
        %1730 = vdwg.mxu0
        %v1731 = vadd.f32 %v1574, %v1726
        %v1732 = vld [vmem:[%s764] sm:$0x1]
        %v1733 = vld [vmem:[%s767] sm:$0x1]
        %v1734 = vsel %vm852, %v1731, 0.0
        %1735 = vadd.xlane.f32.xlu0 %v1734
        %v1736 = vpop.xlane.xlu0 %1735
        %v1737 = vmul.f32 %v1736, %v1550
        %v1738 = vsub.f32 %v1731, %v1737
        %v1739 = vmul.f32 %v1738, %v1738
        %v1740 = vsel %vm852, %v1739, 0.0
        %1741 = vadd.xlane.f32.xlu0 %v1740
        %v1742 = vpop.xlane.xlu0 %1741
        %v1743 = vmul.f32 %v1742, %v1550
        %v1744 = vadd.f32 %v1743, 1e-05
        %v1745 = vrsqrt.pop %v1744
        %v1746 = vmul.f32 %v1738, %v1745
        %v1748 = vlaneseq
        %v1749 = vshrl.u32 %v1748, 7
        %v1750 = vsub.s32 0, %v1749
        %v1751 = vrot.slane %v1732, %v1750
        %v1753 = vmul.f32 %v1746, %v1751
        %v1755 = vlaneseq
        %v1756 = vshrl.u32 %v1755, 7
        %v1757 = vsub.s32 0, %v1756
        %v1758 = vrot.slane %v1733, %v1757
        %v1760 = vadd.f32 %v1753, %v1758
        %1761 = vst.msk [vmem:[#allocation2] sm:$0xff] %vm852, %v1760
        %p1762 = scmp.eq.s32.totalorder %s40, 1
        // Predicated region
        $region97: #{tpu_custom_call.1} parent=79 // pred_check
          %p1763 = pneg %p1762
        $region98: #{tpu_custom_call.1} parent=79 // pred_check_branch
          %1765 = sbr.rel (%p1763) target = $region100
        $region99: #{tpu_custom_call.1} parent=79 // pred_region
          %1766 = vst.msk [vmem:[%s725] sm:$0xff] %vm852, %v1760
        $region100: #{tpu_custom_call.1} parent=79 // pred_fallthru
          _
        %s1767 = sand.u32 %s440, 1
        %s1768 = scalar_lea.sflag [#allocation5], %s1767
        %s1769 = sand.u32 %s440, 1
        %s1770 = smul.addr %s1769, 8
        %s1771 = scalar_lea.vmem [#allocation9], %s1770
        // Predicated region
        $region101: #{tpu_custom_call.1} parent=79 // pred_check
          %p1772 = pneg %p450
        $region102: #{tpu_custom_call.1} parent=79 // pred_check_branch
          %1774 = sbr.rel (%p1772) target = $region104
        $region103: #{tpu_custom_call.1} parent=79 // pred_region
          %s1776 = ssub.s32 128, 128
          %1777 = vsyncadd %s1768, %s1776
          %s1778 = smul.addr %s39, 128
          %s1779 = scalar_lea.hbm %s15, %s1778
          %s1781 = sshll.u32 %s1771, 4
          %s1782 = int_to_ptr.vmem [resolvable:$true] %s1781
          %1784 = dma.vmem_to_hbm [thread:$0]  %s1782, 128, %s1779, %s1768
        $region104: #{tpu_custom_call.1} parent=79 // pred_fallthru
          _
      $region80: #{tpu_custom_call.1} parent=5 // pred_fallthru
        _
      %p1785 = scmp.le.s32.totalorder 2, %s30
      // Predicated region
      $region105: #{tpu_custom_call.1} parent=5 // pred_check
        %p1786 = pneg %p1785
      $region106: #{tpu_custom_call.1} parent=5 // pred_check_branch
        %1788 = sbr.rel (%p1786) target = $region108
      $region107: #{tpu_custom_call.1} parent=5 // pred_region
        %s1789 = ssub.s32 %s30, 2
        // Predicated region
        $region109: #{tpu_custom_call.1} parent=107 // pred_check
          %p1790 = pneg %p456
        $region110: #{tpu_custom_call.1} parent=107 // pred_check_branch
          %1792 = sbr.rel (%p1790) target = $region112
        $region111: #{tpu_custom_call.1} parent=107 // pred_region
          %s1793 = sand.u32 %s441, 1
          %s1794 = scalar_lea.sflag [#allocation5], %s1793
          %s1795 = sand.u32 %s441, 1
          %s1796 = smul.addr %s1795, 8
          %s1797 = scalar_lea.vmem [#allocation9], %s1796
          %1798 = dma.done %s1794, 128
        $region112: #{tpu_custom_call.1} parent=107 // pred_fallthru
          _
      $region108: #{tpu_custom_call.1} parent=5 // pred_fallthru
        _
    $region6: #{tpu_custom_call.1} parent=1 // loop_footer
      %s34 = sadd.s32 1, %s30
    $region7: #{tpu_custom_call.1} parent=1 // loop_footer_branch
      %29 = sbr.rel target = $region3
    $region8: #{tpu_custom_call.1} parent=1 // loop_exit
      _
    %1799 = vsyncpa [#allocation4], 1
    %s1800 = scalar_lea.sflag [#allocation4], 1
    %1801 = vsyncpa %s1800, 1
    %1802 = vsyncpa [#allocation7], 1
    %s1803 = scalar_lea.sflag [#allocation7], 1
    %1804 = vsyncpa %s1803, 1
    %1805 = vsyncpa [#allocation5], 1
    %s1806 = scalar_lea.sflag [#allocation5], 1
    %1807 = vsyncpa %s1806, 1

</llo_original>
